<compile_context>
chip_gen: v6e
topology: v6e:2x2x1
jax: 0.10.0
libtpu: 0.0.40
codegen_flags: <defaults>
</compile_context>

<pallas_src>
import functools

import jax
import jax.numpy as jnp
from jax.experimental import pallas as pl
from jax.experimental.pallas import tpu as pltpu


# -----------------------------------------------------------------------------
# Fused Pallas kernel: stacked LSTM + classifier head + log-softmax
# -----------------------------------------------------------------------------
def _make_fused_kernel(*, T, B_pad, H, num_layers, d_in0):
    """Kernel factory. All arguments are Python statics.

    Ref layout (all VMEM, single grid point):
      x_ref   : (T*B_pad, d_in0) bf16, time-major rows (row = t*B_pad + b)
      w_ref   : (rows, 4H) bf16 packed slab:
                [W_ih0^T (d_in0) | W_hh0^T (H) | W_ih1^T (H) | W_hh1^T (H) | ...
                 | clf_w1^T padded (H) | clf_w2^T padded (H)]
      b_ref   : (8, 4H) f32 packed bias slab:
                row l            = lstm bias layer l (bias_ih + bias_hh folded)
                row num_layers   = clf_b1 (zero padded)
                row num_layers+1 = clf_b2 (-1e30 in padded columns)
      out_ref : (T*B_pad, 4H) f32 log-probs (lane-dense, padded to 128)
    """
    G = 4 * H  # = 128 lanes in the packed layout

    def kernel(x_ref, w_ref, b_ref, out_ref):
        off = 0
        layer_in = x_ref[...]                                     # (T*Bp, d_in0) bf16

        for l in range(num_layers):
            d_in = d_in0 if l == 0 else H
            # Static slices of the packed slab (offsets are multiples of 16/32,
            # i.e. sublane-tile aligned for bf16).
            wih = w_ref[off:off + d_in, :]
            off += d_in
            whh = w_ref[off:off + H, :]
            off += H
            bias = b_ref[l:l + 1, :]                              # (1, 4H) f32

            # Hoisted input projection for ALL timesteps: one MXU matmul per layer.
            gates_x = jnp.dot(layer_in, wih,
                              preferred_element_type=jnp.float32) + bias  # (T*Bp, 4H) f32

            h = jnp.zeros((B_pad, H), jnp.float32)
            c = jnp.zeros((B_pad, H), jnp.float32)
            h_steps = []

            # Fully unrolled recurrence (T static & small): only h @ W_hh and the
            # gate elementwise math remain on the serial critical path.
            for t in range(T):
                g = gates_x[t * B_pad:(t + 1) * B_pad, :] + jnp.dot(
                    h.astype(whh.dtype), whh,
                    preferred_element_type=jnp.float32)           # (Bp, 4H) f32
                # Two full-vreg EUP pushes per step; slice the gates afterwards.
                sg = jax.nn.sigmoid(g)
                tg = jnp.tanh(g)
                i_g = sg[:, 0 * H:1 * H]
                f_g = sg[:, 1 * H:2 * H]
                g_g = tg[:, 2 * H:3 * H]
                o_g = sg[:, 3 * H:4 * H]
                c = f_g * c + i_g * g_g
                h = o_g * jnp.tanh(c)
                h_steps.append(h)

            # One concat per layer; hidden states stay vreg-resident.
            layer_in = jnp.concatenate(h_steps, axis=0).astype(jnp.bfloat16)  # (T*Bp, H)
            # (inter-layer dropout: eval-mode no-op)

        # ---- Classifier head: Linear -> LeakyReLU(0.01) -> Linear -> LogSoftmax
        w1 = w_ref[off:off + H, :]      # (H, 128): columns >= H are zero
        off += H
        w2 = w_ref[off:off + H, :]      # (H, 128): columns >= act_num are zero
        off += H
        b1 = b_ref[num_layers:num_layers + 1, :]
        b2 = b_ref[num_layers + 1:num_layers + 2, :]

        z1 = jnp.dot(layer_in, w1, preferred_element_type=jnp.float32) + b1  # (N, 128)
        a1 = jnp.where(z1 > 0, z1, 0.01 * z1)                                # LeakyReLU
        z2 = jnp.dot(a1[:, :H].astype(jnp.bfloat16), w2,
                     preferred_element_type=jnp.float32) + b2                # (N, 128)
        # Padded logits carry bias -1e30 -> exp() == 0, so normalizing over 128
        # lanes equals normalizing over the real act_num columns.
        m = jnp.max(z2, axis=-1, keepdims=True)
        s = z2 - m
        lse = jnp.log(jnp.sum(jnp.exp(s), axis=-1, keepdims=True))
        out_ref[...] = s - lse

    return kernel


def _fused_act_traj_call(x_flat, w_slab, b_slab, *, T, B_pad, H, num_layers):
    """x_flat: (T*B_pad, Din) bf16 time-major -> (T*B_pad, 128) f32 padded log-probs."""
    N, d_in0 = x_flat.shape
    rows, lanes = w_slab.shape

    kernel = _make_fused_kernel(T=T, B_pad=B_pad, H=H,
                                num_layers=num_layers, d_in0=d_in0)
    return pl.pallas_call(
        kernel,
        out_shape=jax.ShapeDtypeStruct((N, lanes), jnp.float32),
        grid=(1,),
        in_specs=[
            pl.BlockSpec((N, d_in0), lambda i: (0, 0)),        # activations
            pl.BlockSpec((rows, lanes), lambda i: (0, 0)),     # packed bf16 weight slab
            pl.BlockSpec(b_slab.shape, lambda i: (0, 0)),      # packed f32 bias slab
        ],
        out_specs=pl.BlockSpec((N, lanes), lambda i: (0, 0)),
        compiler_params=pltpu.CompilerParams(dimension_semantics=("arbitrary",)),
    )(x_flat, w_slab, b_slab)


# -----------------------------------------------------------------------------
# Parameter construction (deterministic, mirrors ActTrajGen.__init__ shapes),
# with one-time weight/bias slab packing.
# -----------------------------------------------------------------------------
def init_params(cfg, key):
    H = cfg["hidden_size"]
    A = cfg["act_num"]
    L = cfg["rnn_layers"]
    G = 4 * H
    A_PAD = 128
    assert G == 128, "packed-slab layout assumes 4*hidden_size == 128 lanes"
    assert L + 2 <= 8, "bias slab assumes rnn_layers + 2 <= 8 rows"
    input_size = (cfg["usr_emb_dim"] + cfg["usr_feature_dim"]
                  + cfg["act_emb_dim"] + cfg["week_emb_dim"])

    keys = jax.random.split(key, 16)
    kit = iter(keys)

    def randn(shape, scale=0.1):
        return (scale * jax.random.normal(next(kit), shape)).astype(jnp.float32)

    usr_emb = randn((cfg["usr_type_num"], cfg["usr_emb_dim"]))
    act_emb = randn((A + 1, cfg["act_emb_dim"]))
    week_emb = randn((7 + 1, cfg["week_emb_dim"]))

    # LSTM weights: PyTorch stores (4H, d_in)/(4H, H); we keep the transposes for
    # right-multiplication, gate order i, f, g, o.  NOTE: when importing real
    # PyTorch weights, the bias row must be bias_ih + bias_hh folded.
    w_pieces, b_rows = [], []
    for l in range(L):
        d_in = input_size if l == 0 else H
        w_pieces.append(randn((d_in, G)))   # W_ih^T
        w_pieces.append(randn((H, G)))      # W_hh^T
        b_rows.append(randn((G,)))

    w1_T = randn((H, H))
    b1 = randn((H,))
    w2_T = randn((H, A))
    b2 = randn((A,))

    # Classifier weights padded to 128 lanes ONCE here (not per forward call).
    w_pieces.append(jnp.pad(w1_T, ((0, 0), (0, G - H))))
    w_pieces.append(jnp.pad(w2_T, ((0, 0), (0, A_PAD - A))))
    b_rows.append(jnp.pad(b1, (0, G - H)))
    b_rows.append(jnp.pad(b2, (0, A_PAD - A), constant_values=-1e30))

    w_slab = jnp.concatenate(w_pieces, axis=0).astype(jnp.bfloat16)   # (rows, 128) bf16
    b_slab = jnp.stack(b_rows, axis=0)                                # (L+2, 128) f32
    b_slab = jnp.pad(b_slab, ((0, 8 - b_slab.shape[0]), (0, 0)))      # (8, 128) tile

    return {
        "usr_emb": usr_emb,
        "act_emb": act_emb,
        "week_emb": week_emb,
        "w_slab": w_slab,
        "b_slab": b_slab,
    }


# -----------------------------------------------------------------------------
# Forward pass (matches ActTrajGen.forward; eval-mode, dropout no-op)
# -----------------------------------------------------------------------------
@functools.partial(jax.jit, static_argnames=("act_num", "hidden_size", "rnn_layers"))
def act_traj_gen_forward(params, usr_type, usr_feat, weekday, x_act, *,
                         act_num, hidden_size, rnn_layers):
    B, T = x_act.shape
    H = hidden_size
    A = act_num
    B_pad = -(-B // 8) * 8   # pad batch to a full sublane tile

    # Embedding lookups (plain-JAX glue), built directly TIME-MAJOR to avoid a
    # separate (B,T,D)->(T,B,D) transpose of the concatenated tensor.
    # (jnp.take clamps OOB indices instead of erroring like nn.Embedding.)
    # TODO(synk): fuse these gathers into the kernel (scalar-prefetch indices +
    # one-hot MXU lookups) to drop the x_flat HBM round trip entirely.
    usr_e = jnp.take(params["usr_emb"], usr_type, axis=0)          # (B, Eu)
    week_e = jnp.take(params["week_emb"], weekday, axis=0)         # (B, Ew)
    act_e = jnp.take(params["act_emb"], x_act.T, axis=0)           # (T, B, Ea)

    usr_e = jnp.broadcast_to(usr_e[None, :, :], (T, B, usr_e.shape[-1]))
    week_e = jnp.broadcast_to(week_e[None, :, :], (T, B, week_e.shape[-1]))
    usr_f = jnp.broadcast_to(usr_feat.astype(jnp.float32)[None, :, :],
                             (T, B, usr_feat.shape[-1]))

    x = jnp.concatenate([usr_e, usr_f, act_e, week_e], axis=-1)     # (T, B, Din) f32
    x = jnp.pad(x, ((0, 0), (0, B_pad - B), (0, 0)))                # batch -> 8 sublanes
    x_flat = x.reshape(T * B_pad, -1).astype(jnp.bfloat16)          # (T*Bp, Din) bf16

    logp_pad = _fused_act_traj_call(
        x_flat, params["w_slab"], params["b_slab"],
        T=T, B_pad=B_pad, H=H, num_layers=rnn_layers)               # (T*Bp, 128) f32

    logp = logp_pad.reshape(T, B_pad, -1)[:, :B, :A]                # (T, B, A)
    return jnp.transpose(logp, (1, 0, 2))                           # (B, T, A)


# -----------------------------------------------------------------------------
# Main
# -----------------------------------------------------------------------------
if __name__ == "__main__":
    cfg = {
        "device": "tpu",
        "usr_type_num": 5,
        "usr_emb_dim": 8,
        "usr_feature_dim": 8,
        "act_num": 6,
        "act_emb_dim": 8,
        "week_emb_dim": 8,
        "hidden_size": 32,
        "rnn_layers": 2,
        "dropout": 0.0,
    }

    key = jax.random.PRNGKey(0)
    pkey, dkey = jax.random.split(key)
    params = init_params(cfg, pkey)

    B, T = 2, 8
    k1, k2, k3, k4 = jax.random.split(dkey, 4)
    usr_type = jax.random.randint(k1, (B,), 0, cfg["usr_type_num"])
    usr_feat = jax.random.normal(k2, (B, cfg["usr_feature_dim"]), dtype=jnp.float32)
    weekday = jax.random.randint(k3, (B,), 0, 8)
    x_act = jax.random.randint(k4, (B, T), 0, cfg["act_num"] + 1)

    act_log_prob = act_traj_gen_forward(
        params, usr_type, usr_feat, weekday, x_act,
        act_num=cfg["act_num"], hidden_size=cfg["hidden_size"],
        rnn_layers=cfg["rnn_layers"])
    act_log_prob = jax.block_until_ready(act_log_prob)

    assert act_log_prob.shape == (B, T, cfg["act_num"]), act_log_prob.shape
    # log-softmax sanity: probabilities sum to 1 per position
    sums = jnp.exp(act_log_prob).sum(axis=-1)
    assert bool(jnp.allclose(sums, 1.0, atol=1e-3)), sums
    assert bool(jnp.all(jnp.isfinite(act_log_prob)))

    print("KERNEL_OK")
</pallas_src>

<mosaic_0001>
module attributes {stable_mosaic.version = 11 : i64} {
  func.func @kernel(%arg0: i32, %arg1: memref<64x32xbf16, #tpu.memory_space<vmem>>, %arg2: memref<192x128xbf16, #tpu.memory_space<vmem>>, %arg3: memref<8x128xf32, #tpu.memory_space<vmem>>, %arg4: memref<64x128xf32, #tpu.memory_space<vmem>>) attributes {dimension_semantics = [#tpu.dimension_semantics<arbitrary>], iteration_bounds = array<i64: 1>, scalar_prefetch = 0 : i64, scratch_operands = 0 : i64, tpu.core_type = #tpu.core_type<tc>, window_params = [{pipeline_mode = #tpu.pipeline_mode<synchronous>, transform_indices = @transform_0, window_bounds = array<i64: 64, 32>}, {pipeline_mode = #tpu.pipeline_mode<synchronous>, transform_indices = @transform_1, window_bounds = array<i64: 192, 128>}, {pipeline_mode = #tpu.pipeline_mode<synchronous>, transform_indices = @transform_2, window_bounds = array<i64: 8, 128>}, {pipeline_mode = #tpu.pipeline_mode<synchronous>, transform_indices = @transform_3, window_bounds = array<i64: 64, 128>}]} {
    %c0 = arith.constant 0 : index
    %c0_0 = arith.constant 0 : index
    %0 = vector.load %arg1[%c0, %c0_0] : memref<64x32xbf16, #tpu.memory_space<vmem>>, vector<64x32xbf16>
    %c0_1 = arith.constant 0 : index
    %c0_2 = arith.constant 0 : index
    %1 = vector.load %arg2[%c0_1, %c0_2] : memref<192x128xbf16, #tpu.memory_space<vmem>>, vector<32x128xbf16>
    %c32 = arith.constant 32 : index
    %c0_3 = arith.constant 0 : index
    %2 = vector.load %arg2[%c32, %c0_3] : memref<192x128xbf16, #tpu.memory_space<vmem>>, vector<32x128xbf16>
    %c0_4 = arith.constant 0 : index
    %c0_5 = arith.constant 0 : index
    %3 = vector.load %arg3[%c0_4, %c0_5] : memref<8x128xf32, #tpu.memory_space<vmem>>, vector<1x128xf32>
    %cst = arith.constant dense<0.000000e+00> : vector<64x128xf32>
    %4 = tpu.matmul %0, %1, %cst {dimension_numbers = #tpu.dot_dimension_numbers<[1], [0], [0], [1], [0, 0, 1, 1], [], []>} : vector<64x32xbf16>, vector<32x128xbf16>, vector<64x128xf32> -> vector<64x128xf32>
    %5 = vector.broadcast %3 : vector<1x128xf32> to vector<64x128xf32>
    %6 = arith.addf %4, %5 : vector<64x128xf32>
    %cst_6 = arith.constant 0.000000e+00 : f32
    %7 = vector.broadcast %cst_6 : f32 to vector<8x32xf32>
    %cst_7 = arith.constant 0.000000e+00 : f32
    %8 = vector.broadcast %cst_7 : f32 to vector<8x32xf32>
    %9 = vector.extract_strided_slice %6 {offsets = [0, 0], sizes = [8, 128], strides = [1, 1]} : vector<64x128xf32> to vector<8x128xf32>
    %10 = arith.truncf %7 : vector<8x32xf32> to vector<8x32xbf16>
    %cst_8 = arith.constant dense<0.000000e+00> : vector<8x128xf32>
    %11 = tpu.matmul %10, %2, %cst_8 {dimension_numbers = #tpu.dot_dimension_numbers<[1], [0], [0], [1], [0, 0, 1, 1], [], []>} : vector<8x32xbf16>, vector<32x128xbf16>, vector<8x128xf32> -> vector<8x128xf32>
    %12 = arith.addf %9, %11 : vector<8x128xf32>
    %13 = arith.negf %12 : vector<8x128xf32>
    %14 = math.exp %13 : vector<8x128xf32>
    %cst_9 = arith.constant 1.000000e+00 : f32
    %15 = vector.broadcast %cst_9 : f32 to vector<8x128xf32>
    %16 = arith.addf %15, %14 : vector<8x128xf32>
    %17 = arith.divf %15, %16 : vector<8x128xf32>
    %18 = math.tanh %12 : vector<8x128xf32>
    %19 = vector.extract_strided_slice %17 {offsets = [0, 0], sizes = [8, 32], strides = [1, 1]} : vector<8x128xf32> to vector<8x32xf32>
    %20 = vector.extract_strided_slice %17 {offsets = [0, 32], sizes = [8, 32], strides = [1, 1]} : vector<8x128xf32> to vector<8x32xf32>
    %21 = vector.extract_strided_slice %18 {offsets = [0, 64], sizes = [8, 32], strides = [1, 1]} : vector<8x128xf32> to vector<8x32xf32>
    %22 = vector.extract_strided_slice %17 {offsets = [0, 96], sizes = [8, 32], strides = [1, 1]} : vector<8x128xf32> to vector<8x32xf32>
    %23 = arith.mulf %20, %8 : vector<8x32xf32>
    %24 = arith.mulf %19, %21 : vector<8x32xf32>
    %25 = arith.addf %23, %24 : vector<8x32xf32>
    %26 = math.tanh %25 : vector<8x32xf32>
    %27 = arith.mulf %22, %26 : vector<8x32xf32>
    %28 = vector.extract_strided_slice %6 {offsets = [8, 0], sizes = [8, 128], strides = [1, 1]} : vector<64x128xf32> to vector<8x128xf32>
    %29 = arith.truncf %27 : vector<8x32xf32> to vector<8x32xbf16>
    %cst_10 = arith.constant dense<0.000000e+00> : vector<8x128xf32>
    %30 = tpu.matmul %29, %2, %cst_10 {dimension_numbers = #tpu.dot_dimension_numbers<[1], [0], [0], [1], [0, 0, 1, 1], [], []>} : vector<8x32xbf16>, vector<32x128xbf16>, vector<8x128xf32> -> vector<8x128xf32>
    %31 = arith.addf %28, %30 : vector<8x128xf32>
    %32 = arith.negf %31 : vector<8x128xf32>
    %33 = math.exp %32 : vector<8x128xf32>
    %cst_11 = arith.constant 1.000000e+00 : f32
    %34 = vector.broadcast %cst_11 : f32 to vector<8x128xf32>
    %35 = arith.addf %34, %33 : vector<8x128xf32>
    %36 = arith.divf %34, %35 : vector<8x128xf32>
    %37 = math.tanh %31 : vector<8x128xf32>
    %38 = vector.extract_strided_slice %36 {offsets = [0, 0], sizes = [8, 32], strides = [1, 1]} : vector<8x128xf32> to vector<8x32xf32>
    %39 = vector.extract_strided_slice %36 {offsets = [0, 32], sizes = [8, 32], strides = [1, 1]} : vector<8x128xf32> to vector<8x32xf32>
    %40 = vector.extract_strided_slice %37 {offsets = [0, 64], sizes = [8, 32], strides = [1, 1]} : vector<8x128xf32> to vector<8x32xf32>
    %41 = vector.extract_strided_slice %36 {offsets = [0, 96], sizes = [8, 32], strides = [1, 1]} : vector<8x128xf32> to vector<8x32xf32>
    %42 = arith.mulf %39, %25 : vector<8x32xf32>
    %43 = arith.mulf %38, %40 : vector<8x32xf32>
    %44 = arith.addf %42, %43 : vector<8x32xf32>
    %45 = math.tanh %44 : vector<8x32xf32>
    %46 = arith.mulf %41, %45 : vector<8x32xf32>
    %47 = vector.extract_strided_slice %6 {offsets = [16, 0], sizes = [8, 128], strides = [1, 1]} : vector<64x128xf32> to vector<8x128xf32>
    %48 = arith.truncf %46 : vector<8x32xf32> to vector<8x32xbf16>
    %cst_12 = arith.constant dense<0.000000e+00> : vector<8x128xf32>
    %49 = tpu.matmul %48, %2, %cst_12 {dimension_numbers = #tpu.dot_dimension_numbers<[1], [0], [0], [1], [0, 0, 1, 1], [], []>} : vector<8x32xbf16>, vector<32x128xbf16>, vector<8x128xf32> -> vector<8x128xf32>
    %50 = arith.addf %47, %49 : vector<8x128xf32>
    %51 = arith.negf %50 : vector<8x128xf32>
    %52 = math.exp %51 : vector<8x128xf32>
    %cst_13 = arith.constant 1.000000e+00 : f32
    %53 = vector.broadcast %cst_13 : f32 to vector<8x128xf32>
    %54 = arith.addf %53, %52 : vector<8x128xf32>
    %55 = arith.divf %53, %54 : vector<8x128xf32>
    %56 = math.tanh %50 : vector<8x128xf32>
    %57 = vector.extract_strided_slice %55 {offsets = [0, 0], sizes = [8, 32], strides = [1, 1]} : vector<8x128xf32> to vector<8x32xf32>
    %58 = vector.extract_strided_slice %55 {offsets = [0, 32], sizes = [8, 32], strides = [1, 1]} : vector<8x128xf32> to vector<8x32xf32>
    %59 = vector.extract_strided_slice %56 {offsets = [0, 64], sizes = [8, 32], strides = [1, 1]} : vector<8x128xf32> to vector<8x32xf32>
    %60 = vector.extract_strided_slice %55 {offsets = [0, 96], sizes = [8, 32], strides = [1, 1]} : vector<8x128xf32> to vector<8x32xf32>
    %61 = arith.mulf %58, %44 : vector<8x32xf32>
    %62 = arith.mulf %57, %59 : vector<8x32xf32>
    %63 = arith.addf %61, %62 : vector<8x32xf32>
    %64 = math.tanh %63 : vector<8x32xf32>
    %65 = arith.mulf %60, %64 : vector<8x32xf32>
    %66 = vector.extract_strided_slice %6 {offsets = [24, 0], sizes = [8, 128], strides = [1, 1]} : vector<64x128xf32> to vector<8x128xf32>
    %67 = arith.truncf %65 : vector<8x32xf32> to vector<8x32xbf16>
    %cst_14 = arith.constant dense<0.000000e+00> : vector<8x128xf32>
    %68 = tpu.matmul %67, %2, %cst_14 {dimension_numbers = #tpu.dot_dimension_numbers<[1], [0], [0], [1], [0, 0, 1, 1], [], []>} : vector<8x32xbf16>, vector<32x128xbf16>, vector<8x128xf32> -> vector<8x128xf32>
    %69 = arith.addf %66, %68 : vector<8x128xf32>
    %70 = arith.negf %69 : vector<8x128xf32>
    %71 = math.exp %70 : vector<8x128xf32>
    %cst_15 = arith.constant 1.000000e+00 : f32
    %72 = vector.broadcast %cst_15 : f32 to vector<8x128xf32>
    %73 = arith.addf %72, %71 : vector<8x128xf32>
    %74 = arith.divf %72, %73 : vector<8x128xf32>
    %75 = math.tanh %69 : vector<8x128xf32>
    %76 = vector.extract_strided_slice %74 {offsets = [0, 0], sizes = [8, 32], strides = [1, 1]} : vector<8x128xf32> to vector<8x32xf32>
    %77 = vector.extract_strided_slice %74 {offsets = [0, 32], sizes = [8, 32], strides = [1, 1]} : vector<8x128xf32> to vector<8x32xf32>
    %78 = vector.extract_strided_slice %75 {offsets = [0, 64], sizes = [8, 32], strides = [1, 1]} : vector<8x128xf32> to vector<8x32xf32>
    %79 = vector.extract_strided_slice %74 {offsets = [0, 96], sizes = [8, 32], strides = [1, 1]} : vector<8x128xf32> to vector<8x32xf32>
    %80 = arith.mulf %77, %63 : vector<8x32xf32>
    %81 = arith.mulf %76, %78 : vector<8x32xf32>
    %82 = arith.addf %80, %81 : vector<8x32xf32>
    %83 = math.tanh %82 : vector<8x32xf32>
    %84 = arith.mulf %79, %83 : vector<8x32xf32>
    %85 = vector.extract_strided_slice %6 {offsets = [32, 0], sizes = [8, 128], strides = [1, 1]} : vector<64x128xf32> to vector<8x128xf32>
    %86 = arith.truncf %84 : vector<8x32xf32> to vector<8x32xbf16>
    %cst_16 = arith.constant dense<0.000000e+00> : vector<8x128xf32>
    %87 = tpu.matmul %86, %2, %cst_16 {dimension_numbers = #tpu.dot_dimension_numbers<[1], [0], [0], [1], [0, 0, 1, 1], [], []>} : vector<8x32xbf16>, vector<32x128xbf16>, vector<8x128xf32> -> vector<8x128xf32>
    %88 = arith.addf %85, %87 : vector<8x128xf32>
    %89 = arith.negf %88 : vector<8x128xf32>
    %90 = math.exp %89 : vector<8x128xf32>
    %cst_17 = arith.constant 1.000000e+00 : f32
    %91 = vector.broadcast %cst_17 : f32 to vector<8x128xf32>
    %92 = arith.addf %91, %90 : vector<8x128xf32>
    %93 = arith.divf %91, %92 : vector<8x128xf32>
    %94 = math.tanh %88 : vector<8x128xf32>
    %95 = vector.extract_strided_slice %93 {offsets = [0, 0], sizes = [8, 32], strides = [1, 1]} : vector<8x128xf32> to vector<8x32xf32>
    %96 = vector.extract_strided_slice %93 {offsets = [0, 32], sizes = [8, 32], strides = [1, 1]} : vector<8x128xf32> to vector<8x32xf32>
    %97 = vector.extract_strided_slice %94 {offsets = [0, 64], sizes = [8, 32], strides = [1, 1]} : vector<8x128xf32> to vector<8x32xf32>
    %98 = vector.extract_strided_slice %93 {offsets = [0, 96], sizes = [8, 32], strides = [1, 1]} : vector<8x128xf32> to vector<8x32xf32>
    %99 = arith.mulf %96, %82 : vector<8x32xf32>
    %100 = arith.mulf %95, %97 : vector<8x32xf32>
    %101 = arith.addf %99, %100 : vector<8x32xf32>
    %102 = math.tanh %101 : vector<8x32xf32>
    %103 = arith.mulf %98, %102 : vector<8x32xf32>
    %104 = vector.extract_strided_slice %6 {offsets = [40, 0], sizes = [8, 128], strides = [1, 1]} : vector<64x128xf32> to vector<8x128xf32>
    %105 = arith.truncf %103 : vector<8x32xf32> to vector<8x32xbf16>
    %cst_18 = arith.constant dense<0.000000e+00> : vector<8x128xf32>
    %106 = tpu.matmul %105, %2, %cst_18 {dimension_numbers = #tpu.dot_dimension_numbers<[1], [0], [0], [1], [0, 0, 1, 1], [], []>} : vector<8x32xbf16>, vector<32x128xbf16>, vector<8x128xf32> -> vector<8x128xf32>
    %107 = arith.addf %104, %106 : vector<8x128xf32>
    %108 = arith.negf %107 : vector<8x128xf32>
    %109 = math.exp %108 : vector<8x128xf32>
    %cst_19 = arith.constant 1.000000e+00 : f32
    %110 = vector.broadcast %cst_19 : f32 to vector<8x128xf32>
    %111 = arith.addf %110, %109 : vector<8x128xf32>
    %112 = arith.divf %110, %111 : vector<8x128xf32>
    %113 = math.tanh %107 : vector<8x128xf32>
    %114 = vector.extract_strided_slice %112 {offsets = [0, 0], sizes = [8, 32], strides = [1, 1]} : vector<8x128xf32> to vector<8x32xf32>
    %115 = vector.extract_strided_slice %112 {offsets = [0, 32], sizes = [8, 32], strides = [1, 1]} : vector<8x128xf32> to vector<8x32xf32>
    %116 = vector.extract_strided_slice %113 {offsets = [0, 64], sizes = [8, 32], strides = [1, 1]} : vector<8x128xf32> to vector<8x32xf32>
    %117 = vector.extract_strided_slice %112 {offsets = [0, 96], sizes = [8, 32], strides = [1, 1]} : vector<8x128xf32> to vector<8x32xf32>
    %118 = arith.mulf %115, %101 : vector<8x32xf32>
    %119 = arith.mulf %114, %116 : vector<8x32xf32>
    %120 = arith.addf %118, %119 : vector<8x32xf32>
    %121 = math.tanh %120 : vector<8x32xf32>
    %122 = arith.mulf %117, %121 : vector<8x32xf32>
    %123 = vector.extract_strided_slice %6 {offsets = [48, 0], sizes = [8, 128], strides = [1, 1]} : vector<64x128xf32> to vector<8x128xf32>
    %124 = arith.truncf %122 : vector<8x32xf32> to vector<8x32xbf16>
    %cst_20 = arith.constant dense<0.000000e+00> : vector<8x128xf32>
    %125 = tpu.matmul %124, %2, %cst_20 {dimension_numbers = #tpu.dot_dimension_numbers<[1], [0], [0], [1], [0, 0, 1, 1], [], []>} : vector<8x32xbf16>, vector<32x128xbf16>, vector<8x128xf32> -> vector<8x128xf32>
    %126 = arith.addf %123, %125 : vector<8x128xf32>
    %127 = arith.negf %126 : vector<8x128xf32>
    %128 = math.exp %127 : vector<8x128xf32>
    %cst_21 = arith.constant 1.000000e+00 : f32
    %129 = vector.broadcast %cst_21 : f32 to vector<8x128xf32>
    %130 = arith.addf %129, %128 : vector<8x128xf32>
    %131 = arith.divf %129, %130 : vector<8x128xf32>
    %132 = math.tanh %126 : vector<8x128xf32>
    %133 = vector.extract_strided_slice %131 {offsets = [0, 0], sizes = [8, 32], strides = [1, 1]} : vector<8x128xf32> to vector<8x32xf32>
    %134 = vector.extract_strided_slice %131 {offsets = [0, 32], sizes = [8, 32], strides = [1, 1]} : vector<8x128xf32> to vector<8x32xf32>
    %135 = vector.extract_strided_slice %132 {offsets = [0, 64], sizes = [8, 32], strides = [1, 1]} : vector<8x128xf32> to vector<8x32xf32>
    %136 = vector.extract_strided_slice %131 {offsets = [0, 96], sizes = [8, 32], strides = [1, 1]} : vector<8x128xf32> to vector<8x32xf32>
    %137 = arith.mulf %134, %120 : vector<8x32xf32>
    %138 = arith.mulf %133, %135 : vector<8x32xf32>
    %139 = arith.addf %137, %138 : vector<8x32xf32>
    %140 = math.tanh %139 : vector<8x32xf32>
    %141 = arith.mulf %136, %140 : vector<8x32xf32>
    %142 = vector.extract_strided_slice %6 {offsets = [56, 0], sizes = [8, 128], strides = [1, 1]} : vector<64x128xf32> to vector<8x128xf32>
    %143 = arith.truncf %141 : vector<8x32xf32> to vector<8x32xbf16>
    %cst_22 = arith.constant dense<0.000000e+00> : vector<8x128xf32>
    %144 = tpu.matmul %143, %2, %cst_22 {dimension_numbers = #tpu.dot_dimension_numbers<[1], [0], [0], [1], [0, 0, 1, 1], [], []>} : vector<8x32xbf16>, vector<32x128xbf16>, vector<8x128xf32> -> vector<8x128xf32>
    %145 = arith.addf %142, %144 : vector<8x128xf32>
    %146 = arith.negf %145 : vector<8x128xf32>
    %147 = math.exp %146 : vector<8x128xf32>
    %cst_23 = arith.constant 1.000000e+00 : f32
    %148 = vector.broadcast %cst_23 : f32 to vector<8x128xf32>
    %149 = arith.addf %148, %147 : vector<8x128xf32>
    %150 = arith.divf %148, %149 : vector<8x128xf32>
    %151 = math.tanh %145 : vector<8x128xf32>
    %152 = vector.extract_strided_slice %150 {offsets = [0, 0], sizes = [8, 32], strides = [1, 1]} : vector<8x128xf32> to vector<8x32xf32>
    %153 = vector.extract_strided_slice %150 {offsets = [0, 32], sizes = [8, 32], strides = [1, 1]} : vector<8x128xf32> to vector<8x32xf32>
    %154 = vector.extract_strided_slice %151 {offsets = [0, 64], sizes = [8, 32], strides = [1, 1]} : vector<8x128xf32> to vector<8x32xf32>
    %155 = vector.extract_strided_slice %150 {offsets = [0, 96], sizes = [8, 32], strides = [1, 1]} : vector<8x128xf32> to vector<8x32xf32>
    %156 = arith.mulf %153, %139 : vector<8x32xf32>
    %157 = arith.mulf %152, %154 : vector<8x32xf32>
    %158 = arith.addf %156, %157 : vector<8x32xf32>
    %159 = math.tanh %158 : vector<8x32xf32>
    %160 = arith.mulf %155, %159 : vector<8x32xf32>
    %161 = tpu.concatenate %27, %46, %65, %84, %103, %122, %141, %160 in 0 : vector<8x32xf32>, vector<8x32xf32>, vector<8x32xf32>, vector<8x32xf32>, vector<8x32xf32>, vector<8x32xf32>, vector<8x32xf32>, vector<8x32xf32> -> vector<64x32xf32>
    %162 = arith.truncf %161 : vector<64x32xf32> to vector<64x32xbf16>
    %c64 = arith.constant 64 : index
    %c0_24 = arith.constant 0 : index
    %163 = vector.load %arg2[%c64, %c0_24] : memref<192x128xbf16, #tpu.memory_space<vmem>>, vector<32x128xbf16>
    %c96 = arith.constant 96 : index
    %c0_25 = arith.constant 0 : index
    %164 = vector.load %arg2[%c96, %c0_25] : memref<192x128xbf16, #tpu.memory_space<vmem>>, vector<32x128xbf16>
    %c1 = arith.constant 1 : index
    %c0_26 = arith.constant 0 : index
    %165 = vector.load %arg3[%c1, %c0_26] : memref<8x128xf32, #tpu.memory_space<vmem>>, vector<1x128xf32>
    %cst_27 = arith.constant dense<0.000000e+00> : vector<64x128xf32>
    %166 = tpu.matmul %162, %163, %cst_27 {dimension_numbers = #tpu.dot_dimension_numbers<[1], [0], [0], [1], [0, 0, 1, 1], [], []>} : vector<64x32xbf16>, vector<32x128xbf16>, vector<64x128xf32> -> vector<64x128xf32>
    %167 = vector.broadcast %165 : vector<1x128xf32> to vector<64x128xf32>
    %168 = arith.addf %166, %167 : vector<64x128xf32>
    %cst_28 = arith.constant 0.000000e+00 : f32
    %169 = vector.broadcast %cst_28 : f32 to vector<8x32xf32>
    %cst_29 = arith.constant 0.000000e+00 : f32
    %170 = vector.broadcast %cst_29 : f32 to vector<8x32xf32>
    %171 = vector.extract_strided_slice %168 {offsets = [0, 0], sizes = [8, 128], strides = [1, 1]} : vector<64x128xf32> to vector<8x128xf32>
    %172 = arith.truncf %169 : vector<8x32xf32> to vector<8x32xbf16>
    %cst_30 = arith.constant dense<0.000000e+00> : vector<8x128xf32>
    %173 = tpu.matmul %172, %164, %cst_30 {dimension_numbers = #tpu.dot_dimension_numbers<[1], [0], [0], [1], [0, 0, 1, 1], [], []>} : vector<8x32xbf16>, vector<32x128xbf16>, vector<8x128xf32> -> vector<8x128xf32>
    %174 = arith.addf %171, %173 : vector<8x128xf32>
    %175 = arith.negf %174 : vector<8x128xf32>
    %176 = math.exp %175 : vector<8x128xf32>
    %cst_31 = arith.constant 1.000000e+00 : f32
    %177 = vector.broadcast %cst_31 : f32 to vector<8x128xf32>
    %178 = arith.addf %177, %176 : vector<8x128xf32>
    %179 = arith.divf %177, %178 : vector<8x128xf32>
    %180 = math.tanh %174 : vector<8x128xf32>
    %181 = vector.extract_strided_slice %179 {offsets = [0, 0], sizes = [8, 32], strides = [1, 1]} : vector<8x128xf32> to vector<8x32xf32>
    %182 = vector.extract_strided_slice %179 {offsets = [0, 32], sizes = [8, 32], strides = [1, 1]} : vector<8x128xf32> to vector<8x32xf32>
    %183 = vector.extract_strided_slice %180 {offsets = [0, 64], sizes = [8, 32], strides = [1, 1]} : vector<8x128xf32> to vector<8x32xf32>
    %184 = vector.extract_strided_slice %179 {offsets = [0, 96], sizes = [8, 32], strides = [1, 1]} : vector<8x128xf32> to vector<8x32xf32>
    %185 = arith.mulf %182, %170 : vector<8x32xf32>
    %186 = arith.mulf %181, %183 : vector<8x32xf32>
    %187 = arith.addf %185, %186 : vector<8x32xf32>
    %188 = math.tanh %187 : vector<8x32xf32>
    %189 = arith.mulf %184, %188 : vector<8x32xf32>
    %190 = vector.extract_strided_slice %168 {offsets = [8, 0], sizes = [8, 128], strides = [1, 1]} : vector<64x128xf32> to vector<8x128xf32>
    %191 = arith.truncf %189 : vector<8x32xf32> to vector<8x32xbf16>
    %cst_32 = arith.constant dense<0.000000e+00> : vector<8x128xf32>
    %192 = tpu.matmul %191, %164, %cst_32 {dimension_numbers = #tpu.dot_dimension_numbers<[1], [0], [0], [1], [0, 0, 1, 1], [], []>} : vector<8x32xbf16>, vector<32x128xbf16>, vector<8x128xf32> -> vector<8x128xf32>
    %193 = arith.addf %190, %192 : vector<8x128xf32>
    %194 = arith.negf %193 : vector<8x128xf32>
    %195 = math.exp %194 : vector<8x128xf32>
    %cst_33 = arith.constant 1.000000e+00 : f32
    %196 = vector.broadcast %cst_33 : f32 to vector<8x128xf32>
    %197 = arith.addf %196, %195 : vector<8x128xf32>
    %198 = arith.divf %196, %197 : vector<8x128xf32>
    %199 = math.tanh %193 : vector<8x128xf32>
    %200 = vector.extract_strided_slice %198 {offsets = [0, 0], sizes = [8, 32], strides = [1, 1]} : vector<8x128xf32> to vector<8x32xf32>
    %201 = vector.extract_strided_slice %198 {offsets = [0, 32], sizes = [8, 32], strides = [1, 1]} : vector<8x128xf32> to vector<8x32xf32>
    %202 = vector.extract_strided_slice %199 {offsets = [0, 64], sizes = [8, 32], strides = [1, 1]} : vector<8x128xf32> to vector<8x32xf32>
    %203 = vector.extract_strided_slice %198 {offsets = [0, 96], sizes = [8, 32], strides = [1, 1]} : vector<8x128xf32> to vector<8x32xf32>
    %204 = arith.mulf %201, %187 : vector<8x32xf32>
    %205 = arith.mulf %200, %202 : vector<8x32xf32>
    %206 = arith.addf %204, %205 : vector<8x32xf32>
    %207 = math.tanh %206 : vector<8x32xf32>
    %208 = arith.mulf %203, %207 : vector<8x32xf32>
    %209 = vector.extract_strided_slice %168 {offsets = [16, 0], sizes = [8, 128], strides = [1, 1]} : vector<64x128xf32> to vector<8x128xf32>
    %210 = arith.truncf %208 : vector<8x32xf32> to vector<8x32xbf16>
    %cst_34 = arith.constant dense<0.000000e+00> : vector<8x128xf32>
    %211 = tpu.matmul %210, %164, %cst_34 {dimension_numbers = #tpu.dot_dimension_numbers<[1], [0], [0], [1], [0, 0, 1, 1], [], []>} : vector<8x32xbf16>, vector<32x128xbf16>, vector<8x128xf32> -> vector<8x128xf32>
    %212 = arith.addf %209, %211 : vector<8x128xf32>
    %213 = arith.negf %212 : vector<8x128xf32>
    %214 = math.exp %213 : vector<8x128xf32>
    %cst_35 = arith.constant 1.000000e+00 : f32
    %215 = vector.broadcast %cst_35 : f32 to vector<8x128xf32>
    %216 = arith.addf %215, %214 : vector<8x128xf32>
    %217 = arith.divf %215, %216 : vector<8x128xf32>
    %218 = math.tanh %212 : vector<8x128xf32>
    %219 = vector.extract_strided_slice %217 {offsets = [0, 0], sizes = [8, 32], strides = [1, 1]} : vector<8x128xf32> to vector<8x32xf32>
    %220 = vector.extract_strided_slice %217 {offsets = [0, 32], sizes = [8, 32], strides = [1, 1]} : vector<8x128xf32> to vector<8x32xf32>
    %221 = vector.extract_strided_slice %218 {offsets = [0, 64], sizes = [8, 32], strides = [1, 1]} : vector<8x128xf32> to vector<8x32xf32>
    %222 = vector.extract_strided_slice %217 {offsets = [0, 96], sizes = [8, 32], strides = [1, 1]} : vector<8x128xf32> to vector<8x32xf32>
    %223 = arith.mulf %220, %206 : vector<8x32xf32>
    %224 = arith.mulf %219, %221 : vector<8x32xf32>
    %225 = arith.addf %223, %224 : vector<8x32xf32>
    %226 = math.tanh %225 : vector<8x32xf32>
    %227 = arith.mulf %222, %226 : vector<8x32xf32>
    %228 = vector.extract_strided_slice %168 {offsets = [24, 0], sizes = [8, 128], strides = [1, 1]} : vector<64x128xf32> to vector<8x128xf32>
    %229 = arith.truncf %227 : vector<8x32xf32> to vector<8x32xbf16>
    %cst_36 = arith.constant dense<0.000000e+00> : vector<8x128xf32>
    %230 = tpu.matmul %229, %164, %cst_36 {dimension_numbers = #tpu.dot_dimension_numbers<[1], [0], [0], [1], [0, 0, 1, 1], [], []>} : vector<8x32xbf16>, vector<32x128xbf16>, vector<8x128xf32> -> vector<8x128xf32>
    %231 = arith.addf %228, %230 : vector<8x128xf32>
    %232 = arith.negf %231 : vector<8x128xf32>
    %233 = math.exp %232 : vector<8x128xf32>
    %cst_37 = arith.constant 1.000000e+00 : f32
    %234 = vector.broadcast %cst_37 : f32 to vector<8x128xf32>
    %235 = arith.addf %234, %233 : vector<8x128xf32>
    %236 = arith.divf %234, %235 : vector<8x128xf32>
    %237 = math.tanh %231 : vector<8x128xf32>
    %238 = vector.extract_strided_slice %236 {offsets = [0, 0], sizes = [8, 32], strides = [1, 1]} : vector<8x128xf32> to vector<8x32xf32>
    %239 = vector.extract_strided_slice %236 {offsets = [0, 32], sizes = [8, 32], strides = [1, 1]} : vector<8x128xf32> to vector<8x32xf32>
    %240 = vector.extract_strided_slice %237 {offsets = [0, 64], sizes = [8, 32], strides = [1, 1]} : vector<8x128xf32> to vector<8x32xf32>
    %241 = vector.extract_strided_slice %236 {offsets = [0, 96], sizes = [8, 32], strides = [1, 1]} : vector<8x128xf32> to vector<8x32xf32>
    %242 = arith.mulf %239, %225 : vector<8x32xf32>
    %243 = arith.mulf %238, %240 : vector<8x32xf32>
    %244 = arith.addf %242, %243 : vector<8x32xf32>
    %245 = math.tanh %244 : vector<8x32xf32>
    %246 = arith.mulf %241, %245 : vector<8x32xf32>
    %247 = vector.extract_strided_slice %168 {offsets = [32, 0], sizes = [8, 128], strides = [1, 1]} : vector<64x128xf32> to vector<8x128xf32>
    %248 = arith.truncf %246 : vector<8x32xf32> to vector<8x32xbf16>
    %cst_38 = arith.constant dense<0.000000e+00> : vector<8x128xf32>
    %249 = tpu.matmul %248, %164, %cst_38 {dimension_numbers = #tpu.dot_dimension_numbers<[1], [0], [0], [1], [0, 0, 1, 1], [], []>} : vector<8x32xbf16>, vector<32x128xbf16>, vector<8x128xf32> -> vector<8x128xf32>
    %250 = arith.addf %247, %249 : vector<8x128xf32>
    %251 = arith.negf %250 : vector<8x128xf32>
    %252 = math.exp %251 : vector<8x128xf32>
    %cst_39 = arith.constant 1.000000e+00 : f32
    %253 = vector.broadcast %cst_39 : f32 to vector<8x128xf32>
    %254 = arith.addf %253, %252 : vector<8x128xf32>
    %255 = arith.divf %253, %254 : vector<8x128xf32>
    %256 = math.tanh %250 : vector<8x128xf32>
    %257 = vector.extract_strided_slice %255 {offsets = [0, 0], sizes = [8, 32], strides = [1, 1]} : vector<8x128xf32> to vector<8x32xf32>
    %258 = vector.extract_strided_slice %255 {offsets = [0, 32], sizes = [8, 32], strides = [1, 1]} : vector<8x128xf32> to vector<8x32xf32>
    %259 = vector.extract_strided_slice %256 {offsets = [0, 64], sizes = [8, 32], strides = [1, 1]} : vector<8x128xf32> to vector<8x32xf32>
    %260 = vector.extract_strided_slice %255 {offsets = [0, 96], sizes = [8, 32], strides = [1, 1]} : vector<8x128xf32> to vector<8x32xf32>
    %261 = arith.mulf %258, %244 : vector<8x32xf32>
    %262 = arith.mulf %257, %259 : vector<8x32xf32>
    %263 = arith.addf %261, %262 : vector<8x32xf32>
    %264 = math.tanh %263 : vector<8x32xf32>
    %265 = arith.mulf %260, %264 : vector<8x32xf32>
    %266 = vector.extract_strided_slice %168 {offsets = [40, 0], sizes = [8, 128], strides = [1, 1]} : vector<64x128xf32> to vector<8x128xf32>
    %267 = arith.truncf %265 : vector<8x32xf32> to vector<8x32xbf16>
    %cst_40 = arith.constant dense<0.000000e+00> : vector<8x128xf32>
    %268 = tpu.matmul %267, %164, %cst_40 {dimension_numbers = #tpu.dot_dimension_numbers<[1], [0], [0], [1], [0, 0, 1, 1], [], []>} : vector<8x32xbf16>, vector<32x128xbf16>, vector<8x128xf32> -> vector<8x128xf32>
    %269 = arith.addf %266, %268 : vector<8x128xf32>
    %270 = arith.negf %269 : vector<8x128xf32>
    %271 = math.exp %270 : vector<8x128xf32>
    %cst_41 = arith.constant 1.000000e+00 : f32
    %272 = vector.broadcast %cst_41 : f32 to vector<8x128xf32>
    %273 = arith.addf %272, %271 : vector<8x128xf32>
    %274 = arith.divf %272, %273 : vector<8x128xf32>
    %275 = math.tanh %269 : vector<8x128xf32>
    %276 = vector.extract_strided_slice %274 {offsets = [0, 0], sizes = [8, 32], strides = [1, 1]} : vector<8x128xf32> to vector<8x32xf32>
    %277 = vector.extract_strided_slice %274 {offsets = [0, 32], sizes = [8, 32], strides = [1, 1]} : vector<8x128xf32> to vector<8x32xf32>
    %278 = vector.extract_strided_slice %275 {offsets = [0, 64], sizes = [8, 32], strides = [1, 1]} : vector<8x128xf32> to vector<8x32xf32>
    %279 = vector.extract_strided_slice %274 {offsets = [0, 96], sizes = [8, 32], strides = [1, 1]} : vector<8x128xf32> to vector<8x32xf32>
    %280 = arith.mulf %277, %263 : vector<8x32xf32>
    %281 = arith.mulf %276, %278 : vector<8x32xf32>
    %282 = arith.addf %280, %281 : vector<8x32xf32>
    %283 = math.tanh %282 : vector<8x32xf32>
    %284 = arith.mulf %279, %283 : vector<8x32xf32>
    %285 = vector.extract_strided_slice %168 {offsets = [48, 0], sizes = [8, 128], strides = [1, 1]} : vector<64x128xf32> to vector<8x128xf32>
    %286 = arith.truncf %284 : vector<8x32xf32> to vector<8x32xbf16>
    %cst_42 = arith.constant dense<0.000000e+00> : vector<8x128xf32>
    %287 = tpu.matmul %286, %164, %cst_42 {dimension_numbers = #tpu.dot_dimension_numbers<[1], [0], [0], [1], [0, 0, 1, 1], [], []>} : vector<8x32xbf16>, vector<32x128xbf16>, vector<8x128xf32> -> vector<8x128xf32>
    %288 = arith.addf %285, %287 : vector<8x128xf32>
    %289 = arith.negf %288 : vector<8x128xf32>
    %290 = math.exp %289 : vector<8x128xf32>
    %cst_43 = arith.constant 1.000000e+00 : f32
    %291 = vector.broadcast %cst_43 : f32 to vector<8x128xf32>
    %292 = arith.addf %291, %290 : vector<8x128xf32>
    %293 = arith.divf %291, %292 : vector<8x128xf32>
    %294 = math.tanh %288 : vector<8x128xf32>
    %295 = vector.extract_strided_slice %293 {offsets = [0, 0], sizes = [8, 32], strides = [1, 1]} : vector<8x128xf32> to vector<8x32xf32>
    %296 = vector.extract_strided_slice %293 {offsets = [0, 32], sizes = [8, 32], strides = [1, 1]} : vector<8x128xf32> to vector<8x32xf32>
    %297 = vector.extract_strided_slice %294 {offsets = [0, 64], sizes = [8, 32], strides = [1, 1]} : vector<8x128xf32> to vector<8x32xf32>
    %298 = vector.extract_strided_slice %293 {offsets = [0, 96], sizes = [8, 32], strides = [1, 1]} : vector<8x128xf32> to vector<8x32xf32>
    %299 = arith.mulf %296, %282 : vector<8x32xf32>
    %300 = arith.mulf %295, %297 : vector<8x32xf32>
    %301 = arith.addf %299, %300 : vector<8x32xf32>
    %302 = math.tanh %301 : vector<8x32xf32>
    %303 = arith.mulf %298, %302 : vector<8x32xf32>
    %304 = vector.extract_strided_slice %168 {offsets = [56, 0], sizes = [8, 128], strides = [1, 1]} : vector<64x128xf32> to vector<8x128xf32>
    %305 = arith.truncf %303 : vector<8x32xf32> to vector<8x32xbf16>
    %cst_44 = arith.constant dense<0.000000e+00> : vector<8x128xf32>
    %306 = tpu.matmul %305, %164, %cst_44 {dimension_numbers = #tpu.dot_dimension_numbers<[1], [0], [0], [1], [0, 0, 1, 1], [], []>} : vector<8x32xbf16>, vector<32x128xbf16>, vector<8x128xf32> -> vector<8x128xf32>
    %307 = arith.addf %304, %306 : vector<8x128xf32>
    %308 = arith.negf %307 : vector<8x128xf32>
    %309 = math.exp %308 : vector<8x128xf32>
    %cst_45 = arith.constant 1.000000e+00 : f32
    %310 = vector.broadcast %cst_45 : f32 to vector<8x128xf32>
    %311 = arith.addf %310, %309 : vector<8x128xf32>
    %312 = arith.divf %310, %311 : vector<8x128xf32>
    %313 = math.tanh %307 : vector<8x128xf32>
    %314 = vector.extract_strided_slice %312 {offsets = [0, 0], sizes = [8, 32], strides = [1, 1]} : vector<8x128xf32> to vector<8x32xf32>
    %315 = vector.extract_strided_slice %312 {offsets = [0, 32], sizes = [8, 32], strides = [1, 1]} : vector<8x128xf32> to vector<8x32xf32>
    %316 = vector.extract_strided_slice %313 {offsets = [0, 64], sizes = [8, 32], strides = [1, 1]} : vector<8x128xf32> to vector<8x32xf32>
    %317 = vector.extract_strided_slice %312 {offsets = [0, 96], sizes = [8, 32], strides = [1, 1]} : vector<8x128xf32> to vector<8x32xf32>
    %318 = arith.mulf %315, %301 : vector<8x32xf32>
    %319 = arith.mulf %314, %316 : vector<8x32xf32>
    %320 = arith.addf %318, %319 : vector<8x32xf32>
    %321 = math.tanh %320 : vector<8x32xf32>
    %322 = arith.mulf %317, %321 : vector<8x32xf32>
    %323 = tpu.concatenate %189, %208, %227, %246, %265, %284, %303, %322 in 0 : vector<8x32xf32>, vector<8x32xf32>, vector<8x32xf32>, vector<8x32xf32>, vector<8x32xf32>, vector<8x32xf32>, vector<8x32xf32>, vector<8x32xf32> -> vector<64x32xf32>
    %324 = arith.truncf %323 : vector<64x32xf32> to vector<64x32xbf16>
    %c128 = arith.constant 128 : index
    %c0_46 = arith.constant 0 : index
    %325 = vector.load %arg2[%c128, %c0_46] : memref<192x128xbf16, #tpu.memory_space<vmem>>, vector<32x128xbf16>
    %c160 = arith.constant 160 : index
    %c0_47 = arith.constant 0 : index
    %326 = vector.load %arg2[%c160, %c0_47] : memref<192x128xbf16, #tpu.memory_space<vmem>>, vector<32x128xbf16>
    %c2 = arith.constant 2 : index
    %c0_48 = arith.constant 0 : index
    %327 = vector.load %arg3[%c2, %c0_48] : memref<8x128xf32, #tpu.memory_space<vmem>>, vector<1x128xf32>
    %c3 = arith.constant 3 : index
    %c0_49 = arith.constant 0 : index
    %328 = vector.load %arg3[%c3, %c0_49] : memref<8x128xf32, #tpu.memory_space<vmem>>, vector<1x128xf32>
    %cst_50 = arith.constant dense<0.000000e+00> : vector<64x128xf32>
    %329 = tpu.matmul %324, %325, %cst_50 {dimension_numbers = #tpu.dot_dimension_numbers<[1], [0], [0], [1], [0, 0, 1, 1], [], []>} : vector<64x32xbf16>, vector<32x128xbf16>, vector<64x128xf32> -> vector<64x128xf32>
    %330 = vector.broadcast %327 : vector<1x128xf32> to vector<64x128xf32>
    %331 = arith.addf %329, %330 : vector<64x128xf32>
    %cst_51 = arith.constant 0.000000e+00 : f32
    %332 = vector.broadcast %cst_51 : f32 to vector<64x128xf32>
    %333 = arith.cmpf ogt, %331, %332 : vector<64x128xf32>
    %cst_52 = arith.constant 0.00999999977 : f32
    %334 = vector.broadcast %cst_52 : f32 to vector<64x128xf32>
    %335 = arith.mulf %334, %331 : vector<64x128xf32>
    %336 = arith.select %333, %331, %335 : vector<64x128xi1>, vector<64x128xf32>
    %337 = vector.extract_strided_slice %336 {offsets = [0, 0], sizes = [64, 32], strides = [1, 1]} : vector<64x128xf32> to vector<64x32xf32>
    %338 = arith.truncf %337 : vector<64x32xf32> to vector<64x32xbf16>
    %cst_53 = arith.constant dense<0.000000e+00> : vector<64x128xf32>
    %339 = tpu.matmul %338, %326, %cst_53 {dimension_numbers = #tpu.dot_dimension_numbers<[1], [0], [0], [1], [0, 0, 1, 1], [], []>} : vector<64x32xbf16>, vector<32x128xbf16>, vector<64x128xf32> -> vector<64x128xf32>
    %340 = vector.broadcast %328 : vector<1x128xf32> to vector<64x128xf32>
    %341 = arith.addf %339, %340 : vector<64x128xf32>
    %cst_54 = arith.constant dense<0xFF800000> : vector<64xf32>
    %342 = vector.multi_reduction <maximumf>, %341, %cst_54 [1] : vector<64x128xf32> to vector<64xf32>
    %343 = vector.shape_cast %342 : vector<64xf32> to vector<64x1xf32>
    %344 = vector.broadcast %343 : vector<64x1xf32> to vector<64x128xf32>
    %345 = arith.subf %341, %344 : vector<64x128xf32>
    %346 = math.exp %345 : vector<64x128xf32>
    %cst_55 = arith.constant dense<0.000000e+00> : vector<64xf32>
    %347 = vector.multi_reduction <add>, %346, %cst_55 [1] : vector<64x128xf32> to vector<64xf32>
    %348 = vector.shape_cast %347 : vector<64xf32> to vector<64x1xf32>
    %349 = math.log %348 : vector<64x1xf32>
    %350 = vector.broadcast %349 : vector<64x1xf32> to vector<64x128xf32>
    %351 = arith.subf %345, %350 : vector<64x128xf32>
    %c0_56 = arith.constant 0 : index
    %c0_57 = arith.constant 0 : index
    %352 = vector.load %arg4[%c0_56, %c0_57] : memref<64x128xf32, #tpu.memory_space<vmem>>, vector<64x128xf32>
    tpu.vector_store %arg4[%c0_56, %c0_57], %351 {strides = array<i32>} : memref<64x128xf32, #tpu.memory_space<vmem>>, vector<64x128xf32>,
    return
  }
  func.func @transform_0(%arg0: i32) -> (i32, i32) {
    %c0_i32 = arith.constant 0 : i32
    %c0_i32_0 = arith.constant 0 : i32
    %c0_i32_1 = arith.constant 0 : i32
    return %c0_i32, %c0_i32_0 : i32, i32
  }
  func.func @transform_1(%arg0: i32) -> (i32, i32) {
    %c0_i32 = arith.constant 0 : i32
    %c0_i32_0 = arith.constant 0 : i32
    %c0_i32_1 = arith.constant 0 : i32
    return %c0_i32, %c0_i32_0 : i32, i32
  }
  func.func @transform_2(%arg0: i32) -> (i32, i32) {
    %c0_i32 = arith.constant 0 : i32
    %c0_i32_0 = arith.constant 0 : i32
    %c0_i32_1 = arith.constant 0 : i32
    return %c0_i32, %c0_i32_0 : i32, i32
  }
  func.func @transform_3(%arg0: i32) -> (i32, i32) {
    %c0_i32 = arith.constant 0 : i32
    %c0_i32_0 = arith.constant 0 : i32
    %c0_i32_1 = arith.constant 0 : i32
    return %c0_i32, %c0_i32_0 : i32, i32
  }
}

</mosaic_0001>

<llo_original>
// kernel: act_traj_gen_forward.1
$region0: #{act_traj_gen_forward.1}
  #allocation0 [shape = 'u32[]', space=smem, size = 0x4, offset = 0x4, fixed_abs, tag = 'smem constant byte address 0x4 - core index']
  #allocation1 [shape = 'u32[144,128]{1,0:T(1,128)}', space=vmem, size = 0x12000, scoped, tag = 'internal scratch']
  %s0 = inlined_call_operand.vmem [shape: bf16[64,32], index: 0, kind: input, shape index: {}]
  %s1 = inlined_call_operand.vmem [shape: bf16[192,128], index: 1, kind: input, shape index: {}]
  %s2 = inlined_call_operand.vmem [shape: f32[8,128], index: 2, kind: input, shape index: {}]
  %s3 = inlined_call_operand.vmem [shape: f32[64,128], index: 3, kind: output, shape index: {}]
  %s4 = sld [smem:[#allocation0]]
  $region22: #{act_traj_gen_forward.1} parent=0
    _
  %s6 = ssub.s32 1, %s4
  %s7 = scalar_select 0, %s6, %s4
  // Predicated region
  $region2: #{act_traj_gen_forward.1} parent=0 // pred_check
    _
  $region3: #{act_traj_gen_forward.1} parent=0 // pred_check_branch
    %9 = sbr.rel (0) target = $region5
  $region4: #{act_traj_gen_forward.1} parent=0 // pred_region
    _
  $region5: #{act_traj_gen_forward.1} parent=0 // pred_fallthru
    _
  // Predicated region
  $region6: #{act_traj_gen_forward.1} parent=0 // pred_check
    _
  $region7: #{act_traj_gen_forward.1} parent=0 // pred_check_branch
    %11 = sbr.rel (0) target = $region9
  $region8: #{act_traj_gen_forward.1} parent=0 // pred_region
    _
  $region9: #{act_traj_gen_forward.1} parent=0 // pred_fallthru
    _
  // Predicated region
  $region10: #{act_traj_gen_forward.1} parent=0 // pred_check
    _
  $region11: #{act_traj_gen_forward.1} parent=0 // pred_check_branch
    %13 = sbr.rel (0) target = $region13
  $region12: #{act_traj_gen_forward.1} parent=0 // pred_region
    _
  $region13: #{act_traj_gen_forward.1} parent=0 // pred_fallthru
    _
  %v15 = vld [vmem:[%s0] sm:$0xf]
  %v16 = vld [vmem:[%s0 + $0x4] sm:$0xf]
  %v17 = vld [vmem:[%s0 + $0x8] sm:$0xf]
  %v18 = vld [vmem:[%s0 + $0xc] sm:$0xf]
  %v19 = vld [vmem:[%s0 + $0x10] sm:$0xf]
  %v20 = vld [vmem:[%s0 + $0x14] sm:$0xf]
  %v21 = vld [vmem:[%s0 + $0x18] sm:$0xf]
  %v22 = vld [vmem:[%s0 + $0x1c] sm:$0xf]
  %v23 = vld [vmem:[%s1] sm:$0xf]
  %v24 = vld [vmem:[%s1 + $0x4] sm:$0xf]
  %v25 = vld [vmem:[%s1 + $0x8] sm:$0xf]
  %v26 = vld [vmem:[%s1 + $0xc] sm:$0xf]
  %v27 = vld [vmem:[%s1 + $0x10] sm:$0xf]
  %v28 = vld [vmem:[%s1 + $0x14] sm:$0xf]
  %v29 = vld [vmem:[%s1 + $0x18] sm:$0xf]
  %v30 = vld [vmem:[%s1 + $0x1c] sm:$0xf]
  %v31 = vld [vmem:[%s2] sm:$0x1]
  %v32 = vlaneseq
  %v33 = vshrl.u32 %v32, 7
  %v34 = vsub.s32 0, %v33
  %v35 = vrot.slane %v31, %v34
  %v44 = vunpack.c.l.b16 %v15
  %v45 = vunpack.c.l.b16 %v16
  %v46 = vunpack.c.l.b16 %v17
  %v47 = vunpack.c.l.b16 %v18
  %v48 = vunpack.c.l.b16 %v19
  %v49 = vunpack.c.l.b16 %v20
  %v50 = vunpack.c.l.b16 %v21
  %v51 = vunpack.c.l.b16 %v22
  %v52 = vpack.c.b16 %v45, %v44
  %v53 = vpack.c.b16 %v47, %v46
  %v54 = vpack.c.b16 %v49, %v48
  %v55 = vpack.c.b16 %v51, %v50
  %v60 = vunpack.c.l.b16 %v23
  %v61 = vunpack.c.l.b16 %v24
  %v62 = vunpack.c.l.b16 %v25
  %v63 = vunpack.c.l.b16 %v26
  %v64 = vpack.c.b16 %v61, %v60
  %v65 = vpack.c.b16 %v63, %v62
  %vm68 = vcmask 261120
  %v70 = vsel %vm68, %v52, 0
  %v73 = vsel %vm68, %v53, 0
  %v76 = vsel %vm68, %v54, 0
  %v79 = vsel %vm68, %v55, 0
  %81 = vmatprep.subr.bf16.mxu0 0
  %82 = vmatpush1.bf16.msra.mxu0 0
  %83 = vmatprep.subr.bf16.mxu0 0
  %84 = vmatpush1.bf16.msra.mxu0 0
  %85 = vmatprep.subr.bf16.mxu0 0
  %86 = vmatpush1.bf16.msra.mxu0 0
  %87 = vmatprep.subr.bf16.mxu0 0
  %88 = vmatpush1.bf16.msra.mxu0 0
  %89 = vmatprep.subr.bf16.mxu0 0
  %90 = vmatpush1.bf16.msra.mxu0 0
  %91 = vmatprep.subr.bf16.mxu0 0
  %92 = vmatpush1.bf16.msra.mxu0 0
  %93 = vmatprep.subr.bf16.mxu0 0
  %94 = vmatpush1.bf16.msra.mxu0 %v65
  %95 = vmatprep.subr.bf16.mxu0 0
  %96 = vmatpush1.bf16.msra.mxu0 %v64
  %97 = vmatprep.subr.bf16.mxu0 0
  %98 = vmatpush2.bf16.msra.mxu0 0
  %99 = vmatprep.subr.bf16.mxu0 0
  %100 = vmatpush2.bf16.msra.mxu0 0
  %101 = vmatprep.subr.bf16.mxu0 0
  %102 = vmatpush2.bf16.msra.mxu0 0
  %103 = vmatprep.subr.bf16.mxu0 0
  %104 = vmatpush2.bf16.msra.mxu0 0
  %105 = vmatprep.subr.bf16.mxu0 0
  %106 = vmatpush2.bf16.msra.mxu0 0
  %107 = vmatprep.subr.bf16.mxu0 0
  %108 = vmatpush2.bf16.msra.mxu0 0
  %109 = vmatprep.subr.bf16.mxu0 0
  %110 = vmatpush2.bf16.msra.mxu0 0
  %111 = vmatprep.subr.bf16.mxu0 0
  %112 = vmatpush2.bf16.msra.mxu0 0
  %113 = vmatprep.mubr.bf16.mxu0 0
  %114 = vmatmul.mubr.bf16.gmra.mxu0 %v70
  %v115 = vpop.f32.mrf.mxu0
  %v116 = vadd.f32 %v35, %v115
  %v117 = vpop.f32.mrf.mxu0
  %v118 = vpop.f32.mrf.mxu0
  %v119 = vadd.f32 %v35, %v118
  %v120 = vpop.f32.mrf.mxu0
  %121 = vmatprep.mubr.bf16.mxu0 0
  %122 = vmatmul.mubr.bf16.gmra.mxu0 %v73
  %v123 = vpop.f32.mrf.mxu0
  %v124 = vadd.f32 %v35, %v123
  %v125 = vpop.f32.mrf.mxu0
  %v126 = vpop.f32.mrf.mxu0
  %v127 = vadd.f32 %v35, %v126
  %v128 = vpop.f32.mrf.mxu0
  %129 = vmatprep.mubr.bf16.mxu0 0
  %130 = vmatmul.mubr.bf16.gmra.mxu0 %v76
  %v131 = vpop.f32.mrf.mxu0
  %v132 = vadd.f32 %v35, %v131
  %v133 = vpop.f32.mrf.mxu0
  %v134 = vpop.f32.mrf.mxu0
  %v135 = vadd.f32 %v35, %v134
  %v136 = vpop.f32.mrf.mxu0
  %137 = vmatprep.mubr.bf16.mxu0 0
  %138 = vmatmul.mubr.bf16.gmra.mxu0 %v79
  %v139 = vpop.f32.mrf.mxu0
  %v140 = vadd.f32 %v35, %v139
  %v141 = vpop.f32.mrf.mxu0
  %v142 = vpop.f32.mrf.mxu0
  %v143 = vadd.f32 %v35, %v142
  %v144 = vpop.f32.mrf.mxu0
  %145 = vdwg.mxu0
  %v150 = vunpack.c.l.b16 %v27
  %v151 = vunpack.c.l.b16 %v28
  %v152 = vunpack.c.l.b16 %v29
  %v153 = vunpack.c.l.b16 %v30
  %v154 = vpack.c.b16 %v151, %v150
  %v155 = vpack.c.b16 %v153, %v152
  %v159 = vsel %vm68, 0, 0
  %161 = vmatprep.subr.bf16.mxu0 0
  %162 = vmatpush1.bf16.msra.mxu0 0
  %163 = vmatprep.subr.bf16.mxu0 0
  %164 = vmatpush1.bf16.msra.mxu0 0
  %165 = vmatprep.subr.bf16.mxu0 0
  %166 = vmatpush1.bf16.msra.mxu0 0
  %167 = vmatprep.subr.bf16.mxu0 0
  %168 = vmatpush1.bf16.msra.mxu0 0
  %169 = vmatprep.subr.bf16.mxu0 0
  %170 = vmatpush1.bf16.msra.mxu0 0
  %171 = vmatprep.subr.bf16.mxu0 0
  %172 = vmatpush1.bf16.msra.mxu0 0
  %173 = vmatprep.subr.bf16.mxu0 0
  %174 = vmatpush1.bf16.msra.mxu0 %v155
  %175 = vmatprep.subr.bf16.mxu0 0
  %176 = vmatpush1.bf16.msra.mxu0 %v154
  %177 = vmatprep.subr.bf16.mxu0 0
  %178 = vmatpush2.bf16.msra.mxu0 0
  %179 = vmatprep.subr.bf16.mxu0 0
  %180 = vmatpush2.bf16.msra.mxu0 0
  %181 = vmatprep.subr.bf16.mxu0 0
  %182 = vmatpush2.bf16.msra.mxu0 0
  %183 = vmatprep.subr.bf16.mxu0 0
  %184 = vmatpush2.bf16.msra.mxu0 0
  %185 = vmatprep.subr.bf16.mxu0 0
  %186 = vmatpush2.bf16.msra.mxu0 0
  %187 = vmatprep.subr.bf16.mxu0 0
  %188 = vmatpush2.bf16.msra.mxu0 0
  %189 = vmatprep.subr.bf16.mxu0 0
  %190 = vmatpush2.bf16.msra.mxu0 0
  %191 = vmatprep.subr.bf16.mxu0 0
  %192 = vmatpush2.bf16.msra.mxu0 0
  %193 = vmatprep.mubr.bf16.mxu0 0
  %194 = vmatmul.mubr.bf16.gmra.mxu0 %v159
  %v195 = vpop.f32.mrf.mxu0
  %v196 = vadd.f32 0.0, %v195
  %v197 = vpop.f32.mrf.mxu0
  %v198 = vpop.f32.mrf.mxu0
  %v199 = vpop.f32.mrf.mxu0
  %200 = vdwg.mxu0
  %v201 = vadd.f32 %v116, %v196
  %v202 = vxor.u32 %v201, 2147483648
  %v203 = vmul.f32 %v202, 1.442695
  %v204 = vpow.pop %v203
  %v205 = vadd.f32 %v204, 1.0
  %v206 = vrcp.pop %v205
  %v207 = vmul.f32 1.0, %v206
  %v208 = vtanh.pop %v201
  %v209 = vmul.f32 %v207, 0.0
  %211 = vrot.lane.b32.xlu0 %v208, 64
  %v212 = vpop.permute.xlu0 %211
  %v214 = vmul.f32 %v207, %v212
  %216 = vrot.lane.b32.xlu0 %v214, 32
  %v217 = vpop.permute.xlu0 %216
  %v219 = vadd.f32 %v209, %v217
  %v220 = vtanh.pop %v219
  %222 = vrot.lane.b32.xlu0 %v220, 64
  %v223 = vpop.permute.xlu0 %222
  %v225 = vmul.f32 %v207, %v223
  %v226 = vpack.c.bf16 %v225, %v225
  %228 = vrot.lane.b32.xlu0 %v226, 32
  %v229 = vpop.permute.xlu0 %228
  %v231 = vsel %vm68, %v229, 0
  %233 = vmatprep.subr.bf16.mxu0 0
  %234 = vmatpush1.bf16.msra.mxu0 0
  %235 = vmatprep.subr.bf16.mxu0 0
  %236 = vmatpush1.bf16.msra.mxu0 0
  %237 = vmatprep.subr.bf16.mxu0 0
  %238 = vmatpush1.bf16.msra.mxu0 0
  %239 = vmatprep.subr.bf16.mxu0 0
  %240 = vmatpush1.bf16.msra.mxu0 0
  %241 = vmatprep.subr.bf16.mxu0 0
  %242 = vmatpush1.bf16.msra.mxu0 0
  %243 = vmatprep.subr.bf16.mxu0 0
  %244 = vmatpush1.bf16.msra.mxu0 0
  %245 = vmatprep.subr.bf16.mxu0 0
  %246 = vmatpush1.bf16.msra.mxu0 %v155
  %247 = vmatprep.subr.bf16.mxu0 0
  %248 = vmatpush1.bf16.msra.mxu0 %v154
  %249 = vmatprep.subr.bf16.mxu0 0
  %250 = vmatpush2.bf16.msra.mxu0 0
  %251 = vmatprep.subr.bf16.mxu0 0
  %252 = vmatpush2.bf16.msra.mxu0 0
  %253 = vmatprep.subr.bf16.mxu0 0
  %254 = vmatpush2.bf16.msra.mxu0 0
  %255 = vmatprep.subr.bf16.mxu0 0
  %256 = vmatpush2.bf16.msra.mxu0 0
  %257 = vmatprep.subr.bf16.mxu0 0
  %258 = vmatpush2.bf16.msra.mxu0 0
  %259 = vmatprep.subr.bf16.mxu0 0
  %260 = vmatpush2.bf16.msra.mxu0 0
  %261 = vmatprep.subr.bf16.mxu0 0
  %262 = vmatpush2.bf16.msra.mxu0 0
  %263 = vmatprep.subr.bf16.mxu0 0
  %264 = vmatpush2.bf16.msra.mxu0 0
  %265 = vmatprep.mubr.bf16.mxu0 0
  %266 = vmatmul.mubr.bf16.gmra.mxu0 %v231
  %v267 = vpop.f32.mrf.mxu0
  %v268 = vadd.f32 0.0, %v267
  %v269 = vpop.f32.mrf.mxu0
  %v270 = vpop.f32.mrf.mxu0
  %v271 = vpop.f32.mrf.mxu0
  %272 = vdwg.mxu0
  %v273 = vadd.f32 %v119, %v268
  %v274 = vxor.u32 %v273, 2147483648
  %v275 = vmul.f32 %v274, 1.442695
  %v276 = vpow.pop %v275
  %v277 = vadd.f32 %v276, 1.0
  %v278 = vrcp.pop %v277
  %v279 = vmul.f32 1.0, %v278
  %v280 = vtanh.pop %v273
  %v281 = vmul.f32 %v279, %v219
  %283 = vrot.lane.b32.xlu0 %v280, 64
  %v284 = vpop.permute.xlu0 %283
  %v286 = vmul.f32 %v279, %v284
  %288 = vrot.lane.b32.xlu0 %v286, 32
  %v289 = vpop.permute.xlu0 %288
  %v291 = vadd.f32 %v281, %v289
  %v292 = vtanh.pop %v291
  %294 = vrot.lane.b32.xlu0 %v292, 64
  %v295 = vpop.permute.xlu0 %294
  %v297 = vmul.f32 %v279, %v295
  %v298 = vpack.c.bf16 %v297, %v297
  %300 = vrot.lane.b32.xlu0 %v298, 32
  %v301 = vpop.permute.xlu0 %300
  %v303 = vsel %vm68, %v301, 0
  %305 = vmatprep.subr.bf16.mxu0 0
  %306 = vmatpush1.bf16.msra.mxu0 0
  %307 = vmatprep.subr.bf16.mxu0 0
  %308 = vmatpush1.bf16.msra.mxu0 0
  %309 = vmatprep.subr.bf16.mxu0 0
  %310 = vmatpush1.bf16.msra.mxu0 0
  %311 = vmatprep.subr.bf16.mxu0 0
  %312 = vmatpush1.bf16.msra.mxu0 0
  %313 = vmatprep.subr.bf16.mxu0 0
  %314 = vmatpush1.bf16.msra.mxu0 0
  %315 = vmatprep.subr.bf16.mxu0 0
  %316 = vmatpush1.bf16.msra.mxu0 0
  %317 = vmatprep.subr.bf16.mxu0 0
  %318 = vmatpush1.bf16.msra.mxu0 %v155
  %319 = vmatprep.subr.bf16.mxu0 0
  %320 = vmatpush1.bf16.msra.mxu0 %v154
  %321 = vmatprep.subr.bf16.mxu0 0
  %322 = vmatpush2.bf16.msra.mxu0 0
  %323 = vmatprep.subr.bf16.mxu0 0
  %324 = vmatpush2.bf16.msra.mxu0 0
  %325 = vmatprep.subr.bf16.mxu0 0
  %326 = vmatpush2.bf16.msra.mxu0 0
  %327 = vmatprep.subr.bf16.mxu0 0
  %328 = vmatpush2.bf16.msra.mxu0 0
  %329 = vmatprep.subr.bf16.mxu0 0
  %330 = vmatpush2.bf16.msra.mxu0 0
  %331 = vmatprep.subr.bf16.mxu0 0
  %332 = vmatpush2.bf16.msra.mxu0 0
  %333 = vmatprep.subr.bf16.mxu0 0
  %334 = vmatpush2.bf16.msra.mxu0 0
  %335 = vmatprep.subr.bf16.mxu0 0
  %336 = vmatpush2.bf16.msra.mxu0 0
  %337 = vmatprep.mubr.bf16.mxu0 0
  %338 = vmatmul.mubr.bf16.gmra.mxu0 %v303
  %v339 = vpop.f32.mrf.mxu0
  %v340 = vadd.f32 0.0, %v339
  %v341 = vpop.f32.mrf.mxu0
  %v342 = vpop.f32.mrf.mxu0
  %v343 = vpop.f32.mrf.mxu0
  %344 = vdwg.mxu0
  %v345 = vadd.f32 %v124, %v340
  %v346 = vxor.u32 %v345, 2147483648
  %v347 = vmul.f32 %v346, 1.442695
  %v348 = vpow.pop %v347
  %v349 = vadd.f32 %v348, 1.0
  %v350 = vrcp.pop %v349
  %v351 = vmul.f32 1.0, %v350
  %v352 = vtanh.pop %v345
  %v353 = vmul.f32 %v351, %v291
  %355 = vrot.lane.b32.xlu0 %v352, 64
  %v356 = vpop.permute.xlu0 %355
  %v358 = vmul.f32 %v351, %v356
  %360 = vrot.lane.b32.xlu0 %v358, 32
  %v361 = vpop.permute.xlu0 %360
  %v363 = vadd.f32 %v353, %v361
  %v364 = vtanh.pop %v363
  %366 = vrot.lane.b32.xlu0 %v364, 64
  %v367 = vpop.permute.xlu0 %366
  %v369 = vmul.f32 %v351, %v367
  %v370 = vpack.c.bf16 %v369, %v369
  %372 = vrot.lane.b32.xlu0 %v370, 32
  %v373 = vpop.permute.xlu0 %372
  %v375 = vsel %vm68, %v373, 0
  %377 = vmatprep.subr.bf16.mxu0 0
  %378 = vmatpush1.bf16.msra.mxu0 0
  %379 = vmatprep.subr.bf16.mxu0 0
  %380 = vmatpush1.bf16.msra.mxu0 0
  %381 = vmatprep.subr.bf16.mxu0 0
  %382 = vmatpush1.bf16.msra.mxu0 0
  %383 = vmatprep.subr.bf16.mxu0 0
  %384 = vmatpush1.bf16.msra.mxu0 0
  %385 = vmatprep.subr.bf16.mxu0 0
  %386 = vmatpush1.bf16.msra.mxu0 0
  %387 = vmatprep.subr.bf16.mxu0 0
  %388 = vmatpush1.bf16.msra.mxu0 0
  %389 = vmatprep.subr.bf16.mxu0 0
  %390 = vmatpush1.bf16.msra.mxu0 %v155
  %391 = vmatprep.subr.bf16.mxu0 0
  %392 = vmatpush1.bf16.msra.mxu0 %v154
  %393 = vmatprep.subr.bf16.mxu0 0
  %394 = vmatpush2.bf16.msra.mxu0 0
  %395 = vmatprep.subr.bf16.mxu0 0
  %396 = vmatpush2.bf16.msra.mxu0 0
  %397 = vmatprep.subr.bf16.mxu0 0
  %398 = vmatpush2.bf16.msra.mxu0 0
  %399 = vmatprep.subr.bf16.mxu0 0
  %400 = vmatpush2.bf16.msra.mxu0 0
  %401 = vmatprep.subr.bf16.mxu0 0
  %402 = vmatpush2.bf16.msra.mxu0 0
  %403 = vmatprep.subr.bf16.mxu0 0
  %404 = vmatpush2.bf16.msra.mxu0 0
  %405 = vmatprep.subr.bf16.mxu0 0
  %406 = vmatpush2.bf16.msra.mxu0 0
  %407 = vmatprep.subr.bf16.mxu0 0
  %408 = vmatpush2.bf16.msra.mxu0 0
  %409 = vmatprep.mubr.bf16.mxu0 0
  %410 = vmatmul.mubr.bf16.gmra.mxu0 %v375
  %v411 = vpop.f32.mrf.mxu0
  %v412 = vadd.f32 0.0, %v411
  %v413 = vpop.f32.mrf.mxu0
  %v414 = vpop.f32.mrf.mxu0
  %v415 = vpop.f32.mrf.mxu0
  %416 = vdwg.mxu0
  %v417 = vadd.f32 %v127, %v412
  %v418 = vxor.u32 %v417, 2147483648
  %v419 = vmul.f32 %v418, 1.442695
  %v420 = vpow.pop %v419
  %v421 = vadd.f32 %v420, 1.0
  %v422 = vrcp.pop %v421
  %v423 = vmul.f32 1.0, %v422
  %v424 = vtanh.pop %v417
  %v425 = vmul.f32 %v423, %v363
  %427 = vrot.lane.b32.xlu0 %v424, 64
  %v428 = vpop.permute.xlu0 %427
  %v430 = vmul.f32 %v423, %v428
  %432 = vrot.lane.b32.xlu0 %v430, 32
  %v433 = vpop.permute.xlu0 %432
  %v435 = vadd.f32 %v425, %v433
  %v436 = vtanh.pop %v435
  %438 = vrot.lane.b32.xlu0 %v436, 64
  %v439 = vpop.permute.xlu0 %438
  %v441 = vmul.f32 %v423, %v439
  %v442 = vpack.c.bf16 %v441, %v441
  %444 = vrot.lane.b32.xlu0 %v442, 32
  %v445 = vpop.permute.xlu0 %444
  %v447 = vsel %vm68, %v445, 0
  %449 = vmatprep.subr.bf16.mxu0 0
  %450 = vmatpush1.bf16.msra.mxu0 0
  %451 = vmatprep.subr.bf16.mxu0 0
  %452 = vmatpush1.bf16.msra.mxu0 0
  %453 = vmatprep.subr.bf16.mxu0 0
  %454 = vmatpush1.bf16.msra.mxu0 0
  %455 = vmatprep.subr.bf16.mxu0 0
  %456 = vmatpush1.bf16.msra.mxu0 0
  %457 = vmatprep.subr.bf16.mxu0 0
  %458 = vmatpush1.bf16.msra.mxu0 0
  %459 = vmatprep.subr.bf16.mxu0 0
  %460 = vmatpush1.bf16.msra.mxu0 0
  %461 = vmatprep.subr.bf16.mxu0 0
  %462 = vmatpush1.bf16.msra.mxu0 %v155
  %463 = vmatprep.subr.bf16.mxu0 0
  %464 = vmatpush1.bf16.msra.mxu0 %v154
  %465 = vmatprep.subr.bf16.mxu0 0
  %466 = vmatpush2.bf16.msra.mxu0 0
  %467 = vmatprep.subr.bf16.mxu0 0
  %468 = vmatpush2.bf16.msra.mxu0 0
  %469 = vmatprep.subr.bf16.mxu0 0
  %470 = vmatpush2.bf16.msra.mxu0 0
  %471 = vmatprep.subr.bf16.mxu0 0
  %472 = vmatpush2.bf16.msra.mxu0 0
  %473 = vmatprep.subr.bf16.mxu0 0
  %474 = vmatpush2.bf16.msra.mxu0 0
  %475 = vmatprep.subr.bf16.mxu0 0
  %476 = vmatpush2.bf16.msra.mxu0 0
  %477 = vmatprep.subr.bf16.mxu0 0
  %478 = vmatpush2.bf16.msra.mxu0 0
  %479 = vmatprep.subr.bf16.mxu0 0
  %480 = vmatpush2.bf16.msra.mxu0 0
  %481 = vmatprep.mubr.bf16.mxu0 0
  %482 = vmatmul.mubr.bf16.gmra.mxu0 %v447
  %v483 = vpop.f32.mrf.mxu0
  %v484 = vadd.f32 0.0, %v483
  %v485 = vpop.f32.mrf.mxu0
  %v486 = vpop.f32.mrf.mxu0
  %v487 = vpop.f32.mrf.mxu0
  %488 = vdwg.mxu0
  %v489 = vadd.f32 %v132, %v484
  %v490 = vxor.u32 %v489, 2147483648
  %v491 = vmul.f32 %v490, 1.442695
  %v492 = vpow.pop %v491
  %v493 = vadd.f32 %v492, 1.0
  %v494 = vrcp.pop %v493
  %v495 = vmul.f32 1.0, %v494
  %v496 = vtanh.pop %v489
  %v497 = vmul.f32 %v495, %v435
  %499 = vrot.lane.b32.xlu0 %v496, 64
  %v500 = vpop.permute.xlu0 %499
  %v502 = vmul.f32 %v495, %v500
  %504 = vrot.lane.b32.xlu0 %v502, 32
  %v505 = vpop.permute.xlu0 %504
  %v507 = vadd.f32 %v497, %v505
  %v508 = vtanh.pop %v507
  %510 = vrot.lane.b32.xlu0 %v508, 64
  %v511 = vpop.permute.xlu0 %510
  %v513 = vmul.f32 %v495, %v511
  %v514 = vpack.c.bf16 %v513, %v513
  %516 = vrot.lane.b32.xlu0 %v514, 32
  %v517 = vpop.permute.xlu0 %516
  %v519 = vsel %vm68, %v517, 0
  %521 = vmatprep.subr.bf16.mxu0 0
  %522 = vmatpush1.bf16.msra.mxu0 0
  %523 = vmatprep.subr.bf16.mxu0 0
  %524 = vmatpush1.bf16.msra.mxu0 0
  %525 = vmatprep.subr.bf16.mxu0 0
  %526 = vmatpush1.bf16.msra.mxu0 0
  %527 = vmatprep.subr.bf16.mxu0 0
  %528 = vmatpush1.bf16.msra.mxu0 0
  %529 = vmatprep.subr.bf16.mxu0 0
  %530 = vmatpush1.bf16.msra.mxu0 0
  %531 = vmatprep.subr.bf16.mxu0 0
  %532 = vmatpush1.bf16.msra.mxu0 0
  %533 = vmatprep.subr.bf16.mxu0 0
  %534 = vmatpush1.bf16.msra.mxu0 %v155
  %535 = vmatprep.subr.bf16.mxu0 0
  %536 = vmatpush1.bf16.msra.mxu0 %v154
  %537 = vmatprep.subr.bf16.mxu0 0
  %538 = vmatpush2.bf16.msra.mxu0 0
  %539 = vmatprep.subr.bf16.mxu0 0
  %540 = vmatpush2.bf16.msra.mxu0 0
  %541 = vmatprep.subr.bf16.mxu0 0
  %542 = vmatpush2.bf16.msra.mxu0 0
  %543 = vmatprep.subr.bf16.mxu0 0
  %544 = vmatpush2.bf16.msra.mxu0 0
  %545 = vmatprep.subr.bf16.mxu0 0
  %546 = vmatpush2.bf16.msra.mxu0 0
  %547 = vmatprep.subr.bf16.mxu0 0
  %548 = vmatpush2.bf16.msra.mxu0 0
  %549 = vmatprep.subr.bf16.mxu0 0
  %550 = vmatpush2.bf16.msra.mxu0 0
  %551 = vmatprep.subr.bf16.mxu0 0
  %552 = vmatpush2.bf16.msra.mxu0 0
  %553 = vmatprep.mubr.bf16.mxu0 0
  %554 = vmatmul.mubr.bf16.gmra.mxu0 %v519
  %v555 = vpop.f32.mrf.mxu0
  %v556 = vadd.f32 0.0, %v555
  %v557 = vpop.f32.mrf.mxu0
  %v558 = vpop.f32.mrf.mxu0
  %v559 = vpop.f32.mrf.mxu0
  %560 = vdwg.mxu0
  %v561 = vadd.f32 %v135, %v556
  %v562 = vxor.u32 %v561, 2147483648
  %v563 = vmul.f32 %v562, 1.442695
  %v564 = vpow.pop %v563
  %v565 = vadd.f32 %v564, 1.0
  %v566 = vrcp.pop %v565
  %v567 = vmul.f32 1.0, %v566
  %v568 = vtanh.pop %v561
  %v569 = vmul.f32 %v567, %v507
  %571 = vrot.lane.b32.xlu0 %v568, 64
  %v572 = vpop.permute.xlu0 %571
  %v574 = vmul.f32 %v567, %v572
  %576 = vrot.lane.b32.xlu0 %v574, 32
  %v577 = vpop.permute.xlu0 %576
  %v579 = vadd.f32 %v569, %v577
  %v580 = vtanh.pop %v579
  %582 = vrot.lane.b32.xlu0 %v580, 64
  %v583 = vpop.permute.xlu0 %582
  %v585 = vmul.f32 %v567, %v583
  %v586 = vpack.c.bf16 %v585, %v585
  %588 = vrot.lane.b32.xlu0 %v586, 32
  %v589 = vpop.permute.xlu0 %588
  %v591 = vsel %vm68, %v589, 0
  %593 = vmatprep.subr.bf16.mxu0 0
  %594 = vmatpush1.bf16.msra.mxu0 0
  %595 = vmatprep.subr.bf16.mxu0 0
  %596 = vmatpush1.bf16.msra.mxu0 0
  %597 = vmatprep.subr.bf16.mxu0 0
  %598 = vmatpush1.bf16.msra.mxu0 0
  %599 = vmatprep.subr.bf16.mxu0 0
  %600 = vmatpush1.bf16.msra.mxu0 0
  %601 = vmatprep.subr.bf16.mxu0 0
  %602 = vmatpush1.bf16.msra.mxu0 0
  %603 = vmatprep.subr.bf16.mxu0 0
  %604 = vmatpush1.bf16.msra.mxu0 0
  %605 = vmatprep.subr.bf16.mxu0 0
  %606 = vmatpush1.bf16.msra.mxu0 %v155
  %607 = vmatprep.subr.bf16.mxu0 0
  %608 = vmatpush1.bf16.msra.mxu0 %v154
  %609 = vmatprep.subr.bf16.mxu0 0
  %610 = vmatpush2.bf16.msra.mxu0 0
  %611 = vmatprep.subr.bf16.mxu0 0
  %612 = vmatpush2.bf16.msra.mxu0 0
  %613 = vmatprep.subr.bf16.mxu0 0
  %614 = vmatpush2.bf16.msra.mxu0 0
  %615 = vmatprep.subr.bf16.mxu0 0
  %616 = vmatpush2.bf16.msra.mxu0 0
  %617 = vmatprep.subr.bf16.mxu0 0
  %618 = vmatpush2.bf16.msra.mxu0 0
  %619 = vmatprep.subr.bf16.mxu0 0
  %620 = vmatpush2.bf16.msra.mxu0 0
  %621 = vmatprep.subr.bf16.mxu0 0
  %622 = vmatpush2.bf16.msra.mxu0 0
  %623 = vmatprep.subr.bf16.mxu0 0
  %624 = vmatpush2.bf16.msra.mxu0 0
  %625 = vmatprep.mubr.bf16.mxu0 0
  %626 = vmatmul.mubr.bf16.gmra.mxu0 %v591
  %v627 = vpop.f32.mrf.mxu0
  %v628 = vadd.f32 0.0, %v627
  %v629 = vpop.f32.mrf.mxu0
  %v630 = vpop.f32.mrf.mxu0
  %v631 = vpop.f32.mrf.mxu0
  %632 = vdwg.mxu0
  %v633 = vadd.f32 %v140, %v628
  %v634 = vxor.u32 %v633, 2147483648
  %v635 = vmul.f32 %v634, 1.442695
  %v636 = vpow.pop %v635
  %v637 = vadd.f32 %v636, 1.0
  %v638 = vrcp.pop %v637
  %v639 = vmul.f32 1.0, %v638
  %v640 = vtanh.pop %v633
  %v641 = vmul.f32 %v639, %v579
  %643 = vrot.lane.b32.xlu0 %v640, 64
  %v644 = vpop.permute.xlu0 %643
  %v646 = vmul.f32 %v639, %v644
  %648 = vrot.lane.b32.xlu0 %v646, 32
  %v649 = vpop.permute.xlu0 %648
  %v651 = vadd.f32 %v641, %v649
  %v652 = vtanh.pop %v651
  %654 = vrot.lane.b32.xlu0 %v652, 64
  %v655 = vpop.permute.xlu0 %654
  %v657 = vmul.f32 %v639, %v655
  %v658 = vpack.c.bf16 %v657, %v657
  %660 = vrot.lane.b32.xlu0 %v658, 32
  %v661 = vpop.permute.xlu0 %660
  %v663 = vsel %vm68, %v661, 0
  %665 = vmatprep.subr.bf16.mxu0 0
  %666 = vmatpush1.bf16.msra.mxu0 0
  %667 = vmatprep.subr.bf16.mxu0 0
  %668 = vmatpush1.bf16.msra.mxu0 0
  %669 = vmatprep.subr.bf16.mxu0 0
  %670 = vmatpush1.bf16.msra.mxu0 0
  %671 = vmatprep.subr.bf16.mxu0 0
  %672 = vmatpush1.bf16.msra.mxu0 0
  %673 = vmatprep.subr.bf16.mxu0 0
  %674 = vmatpush1.bf16.msra.mxu0 0
  %675 = vmatprep.subr.bf16.mxu0 0
  %676 = vmatpush1.bf16.msra.mxu0 0
  %677 = vmatprep.subr.bf16.mxu0 0
  %678 = vmatpush1.bf16.msra.mxu0 %v155
  %679 = vmatprep.subr.bf16.mxu0 0
  %680 = vmatpush1.bf16.msra.mxu0 %v154
  %681 = vmatprep.subr.bf16.mxu0 0
  %682 = vmatpush2.bf16.msra.mxu0 0
  %683 = vmatprep.subr.bf16.mxu0 0
  %684 = vmatpush2.bf16.msra.mxu0 0
  %685 = vmatprep.subr.bf16.mxu0 0
  %686 = vmatpush2.bf16.msra.mxu0 0
  %687 = vmatprep.subr.bf16.mxu0 0
  %688 = vmatpush2.bf16.msra.mxu0 0
  %689 = vmatprep.subr.bf16.mxu0 0
  %690 = vmatpush2.bf16.msra.mxu0 0
  %691 = vmatprep.subr.bf16.mxu0 0
  %692 = vmatpush2.bf16.msra.mxu0 0
  %693 = vmatprep.subr.bf16.mxu0 0
  %694 = vmatpush2.bf16.msra.mxu0 0
  %695 = vmatprep.subr.bf16.mxu0 0
  %696 = vmatpush2.bf16.msra.mxu0 0
  %697 = vmatprep.mubr.bf16.mxu0 0
  %698 = vmatmul.mubr.bf16.gmra.mxu0 %v663
  %v699 = vpop.f32.mrf.mxu0
  %v700 = vadd.f32 0.0, %v699
  %v701 = vpop.f32.mrf.mxu0
  %v702 = vpop.f32.mrf.mxu0
  %v703 = vpop.f32.mrf.mxu0
  %704 = vdwg.mxu0
  %v705 = vadd.f32 %v143, %v700
  %v706 = vxor.u32 %v705, 2147483648
  %v707 = vmul.f32 %v706, 1.442695
  %v708 = vpow.pop %v707
  %v709 = vadd.f32 %v708, 1.0
  %v710 = vrcp.pop %v709
  %v711 = vmul.f32 1.0, %v710
  %v712 = vtanh.pop %v705
  %v713 = vmul.f32 %v711, %v651
  %715 = vrot.lane.b32.xlu0 %v712, 64
  %v716 = vpop.permute.xlu0 %715
  %v718 = vmul.f32 %v711, %v716
  %720 = vrot.lane.b32.xlu0 %v718, 32
  %v721 = vpop.permute.xlu0 %720
  %v723 = vadd.f32 %v713, %v721
  %v724 = vtanh.pop %v723
  %726 = vrot.lane.b32.xlu0 %v724, 64
  %v727 = vpop.permute.xlu0 %726
  %v729 = vmul.f32 %v711, %v727
  %v730 = vpack.c.bf16 %v297, %v225
  %v731 = vpack.c.bf16 %v441, %v369
  %v732 = vpack.c.bf16 %v585, %v513
  %v733 = vpack.c.bf16 %v729, %v657
  %v734 = vld [vmem:[%s1 + $0x20] sm:$0xf]
  %v735 = vld [vmem:[%s1 + $0x24] sm:$0xf]
  %v736 = vld [vmem:[%s1 + $0x28] sm:$0xf]
  %v737 = vld [vmem:[%s1 + $0x2c] sm:$0xf]
  %v738 = vld [vmem:[%s1 + $0x30] sm:$0xf]
  %v739 = vld [vmem:[%s1 + $0x34] sm:$0xf]
  %v740 = vld [vmem:[%s1 + $0x38] sm:$0xf]
  %v741 = vld [vmem:[%s1 + $0x3c] sm:$0xf]
  %v742 = vld [vmem:[%s2 + $0x1] sm:$0x1]
  %v743 = vlaneseq
  %v744 = vshrl.u32 %v743, 7
  %v745 = vsub.s32 0, %v744
  %v746 = vrot.slane %v742, %v745
  %751 = vrot.lane.b32.xlu0 %v730, 32
  %v752 = vpop.permute.xlu0 %751
  %753 = vrot.lane.b32.xlu0 %v731, 32
  %v754 = vpop.permute.xlu0 %753
  %755 = vrot.lane.b32.xlu0 %v732, 32
  %v756 = vpop.permute.xlu0 %755
  %757 = vrot.lane.b32.xlu0 %v733, 32
  %v758 = vpop.permute.xlu0 %757
  %v763 = vunpack.c.l.b16 %v734
  %v764 = vunpack.c.l.b16 %v735
  %v765 = vunpack.c.l.b16 %v736
  %v766 = vunpack.c.l.b16 %v737
  %v767 = vpack.c.b16 %v764, %v763
  %v768 = vpack.c.b16 %v766, %v765
  %v772 = vsel %vm68, %v752, 0
  %v775 = vsel %vm68, %v754, 0
  %v778 = vsel %vm68, %v756, 0
  %v781 = vsel %vm68, %v758, 0
  %783 = vmatprep.subr.bf16.mxu0 0
  %784 = vmatpush1.bf16.msra.mxu0 0
  %785 = vmatprep.subr.bf16.mxu0 0
  %786 = vmatpush1.bf16.msra.mxu0 0
  %787 = vmatprep.subr.bf16.mxu0 0
  %788 = vmatpush1.bf16.msra.mxu0 0
  %789 = vmatprep.subr.bf16.mxu0 0
  %790 = vmatpush1.bf16.msra.mxu0 0
  %791 = vmatprep.subr.bf16.mxu0 0
  %792 = vmatpush1.bf16.msra.mxu0 0
  %793 = vmatprep.subr.bf16.mxu0 0
  %794 = vmatpush1.bf16.msra.mxu0 0
  %795 = vmatprep.subr.bf16.mxu0 0
  %796 = vmatpush1.bf16.msra.mxu0 %v768
  %797 = vmatprep.subr.bf16.mxu0 0
  %798 = vmatpush1.bf16.msra.mxu0 %v767
  %799 = vmatprep.subr.bf16.mxu0 0
  %800 = vmatpush2.bf16.msra.mxu0 0
  %801 = vmatprep.subr.bf16.mxu0 0
  %802 = vmatpush2.bf16.msra.mxu0 0
  %803 = vmatprep.subr.bf16.mxu0 0
  %804 = vmatpush2.bf16.msra.mxu0 0
  %805 = vmatprep.subr.bf16.mxu0 0
  %806 = vmatpush2.bf16.msra.mxu0 0
  %807 = vmatprep.subr.bf16.mxu0 0
  %808 = vmatpush2.bf16.msra.mxu0 0
  %809 = vmatprep.subr.bf16.mxu0 0
  %810 = vmatpush2.bf16.msra.mxu0 0
  %811 = vmatprep.subr.bf16.mxu0 0
  %812 = vmatpush2.bf16.msra.mxu0 0
  %813 = vmatprep.subr.bf16.mxu0 0
  %814 = vmatpush2.bf16.msra.mxu0 0
  %815 = vmatprep.mubr.bf16.mxu0 0
  %816 = vmatmul.mubr.bf16.gmra.mxu0 %v772
  %v817 = vpop.f32.mrf.mxu0
  %v818 = vadd.f32 %v746, %v817
  %v819 = vpop.f32.mrf.mxu0
  %v820 = vpop.f32.mrf.mxu0
  %v821 = vadd.f32 %v746, %v820
  %v822 = vpop.f32.mrf.mxu0
  %823 = vmatprep.mubr.bf16.mxu0 0
  %824 = vmatmul.mubr.bf16.gmra.mxu0 %v775
  %v825 = vpop.f32.mrf.mxu0
  %v826 = vadd.f32 %v746, %v825
  %v827 = vpop.f32.mrf.mxu0
  %v828 = vpop.f32.mrf.mxu0
  %v829 = vadd.f32 %v746, %v828
  %v830 = vpop.f32.mrf.mxu0
  %831 = vmatprep.mubr.bf16.mxu0 0
  %832 = vmatmul.mubr.bf16.gmra.mxu0 %v778
  %v833 = vpop.f32.mrf.mxu0
  %v834 = vadd.f32 %v746, %v833
  %v835 = vpop.f32.mrf.mxu0
  %v836 = vpop.f32.mrf.mxu0
  %v837 = vadd.f32 %v746, %v836
  %v838 = vpop.f32.mrf.mxu0
  %839 = vmatprep.mubr.bf16.mxu0 0
  %840 = vmatmul.mubr.bf16.gmra.mxu0 %v781
  %v841 = vpop.f32.mrf.mxu0
  %v842 = vadd.f32 %v746, %v841
  %v843 = vpop.f32.mrf.mxu0
  %v844 = vpop.f32.mrf.mxu0
  %v845 = vadd.f32 %v746, %v844
  %v846 = vpop.f32.mrf.mxu0
  %847 = vdwg.mxu0
  %v852 = vunpack.c.l.b16 %v738
  %v853 = vunpack.c.l.b16 %v739
  %v854 = vunpack.c.l.b16 %v740
  %v855 = vunpack.c.l.b16 %v741
  %v856 = vpack.c.b16 %v853, %v852
  %v857 = vpack.c.b16 %v855, %v854
  %860 = vmatprep.subr.bf16.mxu0 0
  %861 = vmatpush1.bf16.msra.mxu0 0
  %862 = vmatprep.subr.bf16.mxu0 0
  %863 = vmatpush1.bf16.msra.mxu0 0
  %864 = vmatprep.subr.bf16.mxu0 0
  %865 = vmatpush1.bf16.msra.mxu0 0
  %866 = vmatprep.subr.bf16.mxu0 0
  %867 = vmatpush1.bf16.msra.mxu0 0
  %868 = vmatprep.subr.bf16.mxu0 0
  %869 = vmatpush1.bf16.msra.mxu0 0
  %870 = vmatprep.subr.bf16.mxu0 0
  %871 = vmatpush1.bf16.msra.mxu0 0
  %872 = vmatprep.subr.bf16.mxu0 0
  %873 = vmatpush1.bf16.msra.mxu0 %v857
  %874 = vmatprep.subr.bf16.mxu0 0
  %875 = vmatpush1.bf16.msra.mxu0 %v856
  %876 = vmatprep.subr.bf16.mxu0 0
  %877 = vmatpush2.bf16.msra.mxu0 0
  %878 = vmatprep.subr.bf16.mxu0 0
  %879 = vmatpush2.bf16.msra.mxu0 0
  %880 = vmatprep.subr.bf16.mxu0 0
  %881 = vmatpush2.bf16.msra.mxu0 0
  %882 = vmatprep.subr.bf16.mxu0 0
  %883 = vmatpush2.bf16.msra.mxu0 0
  %884 = vmatprep.subr.bf16.mxu0 0
  %885 = vmatpush2.bf16.msra.mxu0 0
  %886 = vmatprep.subr.bf16.mxu0 0
  %887 = vmatpush2.bf16.msra.mxu0 0
  %888 = vmatprep.subr.bf16.mxu0 0
  %889 = vmatpush2.bf16.msra.mxu0 0
  %890 = vmatprep.subr.bf16.mxu0 0
  %891 = vmatpush2.bf16.msra.mxu0 0
  %892 = vmatprep.mubr.bf16.mxu0 0
  %893 = vmatmul.mubr.bf16.gmra.mxu0 %v159
  %v894 = vpop.f32.mrf.mxu0
  %v895 = vadd.f32 0.0, %v894
  %v896 = vpop.f32.mrf.mxu0
  %v897 = vpop.f32.mrf.mxu0
  %v898 = vpop.f32.mrf.mxu0
  %899 = vdwg.mxu0
  %v900 = vadd.f32 %v818, %v895
  %v901 = vxor.u32 %v900, 2147483648
  %v902 = vmul.f32 %v901, 1.442695
  %v903 = vpow.pop %v902
  %v904 = vadd.f32 %v903, 1.0
  %v905 = vrcp.pop %v904
  %v906 = vmul.f32 1.0, %v905
  %v907 = vtanh.pop %v900
  %v908 = vmul.f32 %v906, 0.0
  %910 = vrot.lane.b32.xlu0 %v907, 64
  %v911 = vpop.permute.xlu0 %910
  %v913 = vmul.f32 %v906, %v911
  %915 = vrot.lane.b32.xlu0 %v913, 32
  %v916 = vpop.permute.xlu0 %915
  %v918 = vadd.f32 %v908, %v916
  %v919 = vtanh.pop %v918
  %921 = vrot.lane.b32.xlu0 %v919, 64
  %v922 = vpop.permute.xlu0 %921
  %v924 = vmul.f32 %v906, %v922
  %v925 = vpack.c.bf16 %v924, %v924
  %927 = vrot.lane.b32.xlu0 %v925, 32
  %v928 = vpop.permute.xlu0 %927
  %v930 = vsel %vm68, %v928, 0
  %932 = vmatprep.subr.bf16.mxu0 0
  %933 = vmatpush1.bf16.msra.mxu0 0
  %934 = vmatprep.subr.bf16.mxu0 0
  %935 = vmatpush1.bf16.msra.mxu0 0
  %936 = vmatprep.subr.bf16.mxu0 0
  %937 = vmatpush1.bf16.msra.mxu0 0
  %938 = vmatprep.subr.bf16.mxu0 0
  %939 = vmatpush1.bf16.msra.mxu0 0
  %940 = vmatprep.subr.bf16.mxu0 0
  %941 = vmatpush1.bf16.msra.mxu0 0
  %942 = vmatprep.subr.bf16.mxu0 0
  %943 = vmatpush1.bf16.msra.mxu0 0
  %944 = vmatprep.subr.bf16.mxu0 0
  %945 = vmatpush1.bf16.msra.mxu0 %v857
  %946 = vmatprep.subr.bf16.mxu0 0
  %947 = vmatpush1.bf16.msra.mxu0 %v856
  %948 = vmatprep.subr.bf16.mxu0 0
  %949 = vmatpush2.bf16.msra.mxu0 0
  %950 = vmatprep.subr.bf16.mxu0 0
  %951 = vmatpush2.bf16.msra.mxu0 0
  %952 = vmatprep.subr.bf16.mxu0 0
  %953 = vmatpush2.bf16.msra.mxu0 0
  %954 = vmatprep.subr.bf16.mxu0 0
  %955 = vmatpush2.bf16.msra.mxu0 0
  %956 = vmatprep.subr.bf16.mxu0 0
  %957 = vmatpush2.bf16.msra.mxu0 0
  %958 = vmatprep.subr.bf16.mxu0 0
  %959 = vmatpush2.bf16.msra.mxu0 0
  %960 = vmatprep.subr.bf16.mxu0 0
  %961 = vmatpush2.bf16.msra.mxu0 0
  %962 = vmatprep.subr.bf16.mxu0 0
  %963 = vmatpush2.bf16.msra.mxu0 0
  %964 = vmatprep.mubr.bf16.mxu0 0
  %965 = vmatmul.mubr.bf16.gmra.mxu0 %v930
  %v966 = vpop.f32.mrf.mxu0
  %v967 = vadd.f32 0.0, %v966
  %v968 = vpop.f32.mrf.mxu0
  %v969 = vpop.f32.mrf.mxu0
  %v970 = vpop.f32.mrf.mxu0
  %971 = vdwg.mxu0
  %v972 = vadd.f32 %v821, %v967
  %v973 = vxor.u32 %v972, 2147483648
  %v974 = vmul.f32 %v973, 1.442695
  %v975 = vpow.pop %v974
  %v976 = vadd.f32 %v975, 1.0
  %v977 = vrcp.pop %v976
  %v978 = vmul.f32 1.0, %v977
  %v979 = vtanh.pop %v972
  %v980 = vmul.f32 %v978, %v918
  %982 = vrot.lane.b32.xlu0 %v979, 64
  %v983 = vpop.permute.xlu0 %982
  %v985 = vmul.f32 %v978, %v983
  %987 = vrot.lane.b32.xlu0 %v985, 32
  %v988 = vpop.permute.xlu0 %987
  %v990 = vadd.f32 %v980, %v988
  %v991 = vtanh.pop %v990
  %993 = vrot.lane.b32.xlu0 %v991, 64
  %v994 = vpop.permute.xlu0 %993
  %v996 = vmul.f32 %v978, %v994
  %v997 = vpack.c.bf16 %v996, %v996
  %999 = vrot.lane.b32.xlu0 %v997, 32
  %v1000 = vpop.permute.xlu0 %999
  %v1002 = vsel %vm68, %v1000, 0
  %1004 = vmatprep.subr.bf16.mxu0 0
  %1005 = vmatpush1.bf16.msra.mxu0 0
  %1006 = vmatprep.subr.bf16.mxu0 0
  %1007 = vmatpush1.bf16.msra.mxu0 0
  %1008 = vmatprep.subr.bf16.mxu0 0
  %1009 = vmatpush1.bf16.msra.mxu0 0
  %1010 = vmatprep.subr.bf16.mxu0 0
  %1011 = vmatpush1.bf16.msra.mxu0 0
  %1012 = vmatprep.subr.bf16.mxu0 0
  %1013 = vmatpush1.bf16.msra.mxu0 0
  %1014 = vmatprep.subr.bf16.mxu0 0
  %1015 = vmatpush1.bf16.msra.mxu0 0
  %1016 = vmatprep.subr.bf16.mxu0 0
  %1017 = vmatpush1.bf16.msra.mxu0 %v857
  %1018 = vmatprep.subr.bf16.mxu0 0
  %1019 = vmatpush1.bf16.msra.mxu0 %v856
  %1020 = vmatprep.subr.bf16.mxu0 0
  %1021 = vmatpush2.bf16.msra.mxu0 0
  %1022 = vmatprep.subr.bf16.mxu0 0
  %1023 = vmatpush2.bf16.msra.mxu0 0
  %1024 = vmatprep.subr.bf16.mxu0 0
  %1025 = vmatpush2.bf16.msra.mxu0 0
  %1026 = vmatprep.subr.bf16.mxu0 0
  %1027 = vmatpush2.bf16.msra.mxu0 0
  %1028 = vmatprep.subr.bf16.mxu0 0
  %1029 = vmatpush2.bf16.msra.mxu0 0
  %1030 = vmatprep.subr.bf16.mxu0 0
  %1031 = vmatpush2.bf16.msra.mxu0 0
  %1032 = vmatprep.subr.bf16.mxu0 0
  %1033 = vmatpush2.bf16.msra.mxu0 0
  %1034 = vmatprep.subr.bf16.mxu0 0
  %1035 = vmatpush2.bf16.msra.mxu0 0
  %1036 = vmatprep.mubr.bf16.mxu0 0
  %1037 = vmatmul.mubr.bf16.gmra.mxu0 %v1002
  %v1038 = vpop.f32.mrf.mxu0
  %v1039 = vadd.f32 0.0, %v1038
  %v1040 = vpop.f32.mrf.mxu0
  %v1041 = vpop.f32.mrf.mxu0
  %v1042 = vpop.f32.mrf.mxu0
  %1043 = vdwg.mxu0
  %v1044 = vadd.f32 %v826, %v1039
  %v1045 = vxor.u32 %v1044, 2147483648
  %v1046 = vmul.f32 %v1045, 1.442695
  %v1047 = vpow.pop %v1046
  %v1048 = vadd.f32 %v1047, 1.0
  %v1049 = vrcp.pop %v1048
  %v1050 = vmul.f32 1.0, %v1049
  %v1051 = vtanh.pop %v1044
  %v1052 = vmul.f32 %v1050, %v990
  %1054 = vrot.lane.b32.xlu0 %v1051, 64
  %v1055 = vpop.permute.xlu0 %1054
  %v1057 = vmul.f32 %v1050, %v1055
  %1059 = vrot.lane.b32.xlu0 %v1057, 32
  %v1060 = vpop.permute.xlu0 %1059
  %v1062 = vadd.f32 %v1052, %v1060
  %v1063 = vtanh.pop %v1062
  %1065 = vrot.lane.b32.xlu0 %v1063, 64
  %v1066 = vpop.permute.xlu0 %1065
  %v1068 = vmul.f32 %v1050, %v1066
  %v1069 = vpack.c.bf16 %v1068, %v1068
  %1071 = vrot.lane.b32.xlu0 %v1069, 32
  %v1072 = vpop.permute.xlu0 %1071
  %v1074 = vsel %vm68, %v1072, 0
  %1076 = vmatprep.subr.bf16.mxu0 0
  %1077 = vmatpush1.bf16.msra.mxu0 0
  %1078 = vmatprep.subr.bf16.mxu0 0
  %1079 = vmatpush1.bf16.msra.mxu0 0
  %1080 = vmatprep.subr.bf16.mxu0 0
  %1081 = vmatpush1.bf16.msra.mxu0 0
  %1082 = vmatprep.subr.bf16.mxu0 0
  %1083 = vmatpush1.bf16.msra.mxu0 0
  %1084 = vmatprep.subr.bf16.mxu0 0
  %1085 = vmatpush1.bf16.msra.mxu0 0
  %1086 = vmatprep.subr.bf16.mxu0 0
  %1087 = vmatpush1.bf16.msra.mxu0 0
  %1088 = vmatprep.subr.bf16.mxu0 0
  %1089 = vmatpush1.bf16.msra.mxu0 %v857
  %1090 = vmatprep.subr.bf16.mxu0 0
  %1091 = vmatpush1.bf16.msra.mxu0 %v856
  %1092 = vmatprep.subr.bf16.mxu0 0
  %1093 = vmatpush2.bf16.msra.mxu0 0
  %1094 = vmatprep.subr.bf16.mxu0 0
  %1095 = vmatpush2.bf16.msra.mxu0 0
  %1096 = vmatprep.subr.bf16.mxu0 0
  %1097 = vmatpush2.bf16.msra.mxu0 0
  %1098 = vmatprep.subr.bf16.mxu0 0
  %1099 = vmatpush2.bf16.msra.mxu0 0
  %1100 = vmatprep.subr.bf16.mxu0 0
  %1101 = vmatpush2.bf16.msra.mxu0 0
  %1102 = vmatprep.subr.bf16.mxu0 0
  %1103 = vmatpush2.bf16.msra.mxu0 0
  %1104 = vmatprep.subr.bf16.mxu0 0
  %1105 = vmatpush2.bf16.msra.mxu0 0
  %1106 = vmatprep.subr.bf16.mxu0 0
  %1107 = vmatpush2.bf16.msra.mxu0 0
  %1108 = vmatprep.mubr.bf16.mxu0 0
  %1109 = vmatmul.mubr.bf16.gmra.mxu0 %v1074
  %v1110 = vpop.f32.mrf.mxu0
  %v1111 = vadd.f32 0.0, %v1110
  %v1112 = vpop.f32.mrf.mxu0
  %v1113 = vpop.f32.mrf.mxu0
  %v1114 = vpop.f32.mrf.mxu0
  %1115 = vdwg.mxu0
  %v1116 = vadd.f32 %v829, %v1111
  %v1117 = vxor.u32 %v1116, 2147483648
  %v1118 = vmul.f32 %v1117, 1.442695
  %v1119 = vpow.pop %v1118
  %v1120 = vadd.f32 %v1119, 1.0
  %v1121 = vrcp.pop %v1120
  %v1122 = vmul.f32 1.0, %v1121
  %v1123 = vtanh.pop %v1116
  %v1124 = vmul.f32 %v1122, %v1062
  %1126 = vrot.lane.b32.xlu0 %v1123, 64
  %v1127 = vpop.permute.xlu0 %1126
  %v1129 = vmul.f32 %v1122, %v1127
  %1131 = vrot.lane.b32.xlu0 %v1129, 32
  %v1132 = vpop.permute.xlu0 %1131
  %v1134 = vadd.f32 %v1124, %v1132
  %v1135 = vtanh.pop %v1134
  %1137 = vrot.lane.b32.xlu0 %v1135, 64
  %v1138 = vpop.permute.xlu0 %1137
  %v1140 = vmul.f32 %v1122, %v1138
  %v1141 = vpack.c.bf16 %v1140, %v1140
  %1143 = vrot.lane.b32.xlu0 %v1141, 32
  %v1144 = vpop.permute.xlu0 %1143
  %v1146 = vsel %vm68, %v1144, 0
  %1148 = vmatprep.subr.bf16.mxu0 0
  %1149 = vmatpush1.bf16.msra.mxu0 0
  %1150 = vmatprep.subr.bf16.mxu0 0
  %1151 = vmatpush1.bf16.msra.mxu0 0
  %1152 = vmatprep.subr.bf16.mxu0 0
  %1153 = vmatpush1.bf16.msra.mxu0 0
  %1154 = vmatprep.subr.bf16.mxu0 0
  %1155 = vmatpush1.bf16.msra.mxu0 0
  %1156 = vmatprep.subr.bf16.mxu0 0
  %1157 = vmatpush1.bf16.msra.mxu0 0
  %1158 = vmatprep.subr.bf16.mxu0 0
  %1159 = vmatpush1.bf16.msra.mxu0 0
  %1160 = vmatprep.subr.bf16.mxu0 0
  %1161 = vmatpush1.bf16.msra.mxu0 %v857
  %1162 = vmatprep.subr.bf16.mxu0 0
  %1163 = vmatpush1.bf16.msra.mxu0 %v856
  %1164 = vmatprep.subr.bf16.mxu0 0
  %1165 = vmatpush2.bf16.msra.mxu0 0
  %1166 = vmatprep.subr.bf16.mxu0 0
  %1167 = vmatpush2.bf16.msra.mxu0 0
  %1168 = vmatprep.subr.bf16.mxu0 0
  %1169 = vmatpush2.bf16.msra.mxu0 0
  %1170 = vmatprep.subr.bf16.mxu0 0
  %1171 = vmatpush2.bf16.msra.mxu0 0
  %1172 = vmatprep.subr.bf16.mxu0 0
  %1173 = vmatpush2.bf16.msra.mxu0 0
  %1174 = vmatprep.subr.bf16.mxu0 0
  %1175 = vmatpush2.bf16.msra.mxu0 0
  %1176 = vmatprep.subr.bf16.mxu0 0
  %1177 = vmatpush2.bf16.msra.mxu0 0
  %1178 = vmatprep.subr.bf16.mxu0 0
  %1179 = vmatpush2.bf16.msra.mxu0 0
  %1180 = vmatprep.mubr.bf16.mxu0 0
  %1181 = vmatmul.mubr.bf16.gmra.mxu0 %v1146
  %v1182 = vpop.f32.mrf.mxu0
  %v1183 = vadd.f32 0.0, %v1182
  %v1184 = vpop.f32.mrf.mxu0
  %v1185 = vpop.f32.mrf.mxu0
  %v1186 = vpop.f32.mrf.mxu0
  %1187 = vdwg.mxu0
  %v1188 = vadd.f32 %v834, %v1183
  %v1189 = vxor.u32 %v1188, 2147483648
  %v1190 = vmul.f32 %v1189, 1.442695
  %v1191 = vpow.pop %v1190
  %v1192 = vadd.f32 %v1191, 1.0
  %v1193 = vrcp.pop %v1192
  %v1194 = vmul.f32 1.0, %v1193
  %v1195 = vtanh.pop %v1188
  %v1196 = vmul.f32 %v1194, %v1134
  %1198 = vrot.lane.b32.xlu0 %v1195, 64
  %v1199 = vpop.permute.xlu0 %1198
  %v1201 = vmul.f32 %v1194, %v1199
  %1203 = vrot.lane.b32.xlu0 %v1201, 32
  %v1204 = vpop.permute.xlu0 %1203
  %v1206 = vadd.f32 %v1196, %v1204
  %v1207 = vtanh.pop %v1206
  %1209 = vrot.lane.b32.xlu0 %v1207, 64
  %v1210 = vpop.permute.xlu0 %1209
  %v1212 = vmul.f32 %v1194, %v1210
  %v1213 = vpack.c.bf16 %v1212, %v1212
  %1215 = vrot.lane.b32.xlu0 %v1213, 32
  %v1216 = vpop.permute.xlu0 %1215
  %v1218 = vsel %vm68, %v1216, 0
  %1220 = vmatprep.subr.bf16.mxu0 0
  %1221 = vmatpush1.bf16.msra.mxu0 0
  %1222 = vmatprep.subr.bf16.mxu0 0
  %1223 = vmatpush1.bf16.msra.mxu0 0
  %1224 = vmatprep.subr.bf16.mxu0 0
  %1225 = vmatpush1.bf16.msra.mxu0 0
  %1226 = vmatprep.subr.bf16.mxu0 0
  %1227 = vmatpush1.bf16.msra.mxu0 0
  %1228 = vmatprep.subr.bf16.mxu0 0
  %1229 = vmatpush1.bf16.msra.mxu0 0
  %1230 = vmatprep.subr.bf16.mxu0 0
  %1231 = vmatpush1.bf16.msra.mxu0 0
  %1232 = vmatprep.subr.bf16.mxu0 0
  %1233 = vmatpush1.bf16.msra.mxu0 %v857
  %1234 = vmatprep.subr.bf16.mxu0 0
  %1235 = vmatpush1.bf16.msra.mxu0 %v856
  %1236 = vmatprep.subr.bf16.mxu0 0
  %1237 = vmatpush2.bf16.msra.mxu0 0
  %1238 = vmatprep.subr.bf16.mxu0 0
  %1239 = vmatpush2.bf16.msra.mxu0 0
  %1240 = vmatprep.subr.bf16.mxu0 0
  %1241 = vmatpush2.bf16.msra.mxu0 0
  %1242 = vmatprep.subr.bf16.mxu0 0
  %1243 = vmatpush2.bf16.msra.mxu0 0
  %1244 = vmatprep.subr.bf16.mxu0 0
  %1245 = vmatpush2.bf16.msra.mxu0 0
  %1246 = vmatprep.subr.bf16.mxu0 0
  %1247 = vmatpush2.bf16.msra.mxu0 0
  %1248 = vmatprep.subr.bf16.mxu0 0
  %1249 = vmatpush2.bf16.msra.mxu0 0
  %1250 = vmatprep.subr.bf16.mxu0 0
  %1251 = vmatpush2.bf16.msra.mxu0 0
  %1252 = vmatprep.mubr.bf16.mxu0 0
  %1253 = vmatmul.mubr.bf16.gmra.mxu0 %v1218
  %v1254 = vpop.f32.mrf.mxu0
  %v1255 = vadd.f32 0.0, %v1254
  %v1256 = vpop.f32.mrf.mxu0
  %v1257 = vpop.f32.mrf.mxu0
  %v1258 = vpop.f32.mrf.mxu0
  %1259 = vdwg.mxu0
  %v1260 = vadd.f32 %v837, %v1255
  %v1261 = vxor.u32 %v1260, 2147483648
  %v1262 = vmul.f32 %v1261, 1.442695
  %v1263 = vpow.pop %v1262
  %v1264 = vadd.f32 %v1263, 1.0
  %v1265 = vrcp.pop %v1264
  %v1266 = vmul.f32 1.0, %v1265
  %v1267 = vtanh.pop %v1260
  %v1268 = vmul.f32 %v1266, %v1206
  %1270 = vrot.lane.b32.xlu0 %v1267, 64
  %v1271 = vpop.permute.xlu0 %1270
  %v1273 = vmul.f32 %v1266, %v1271
  %1275 = vrot.lane.b32.xlu0 %v1273, 32
  %v1276 = vpop.permute.xlu0 %1275
  %v1278 = vadd.f32 %v1268, %v1276
  %v1279 = vtanh.pop %v1278
  %1281 = vrot.lane.b32.xlu0 %v1279, 64
  %v1282 = vpop.permute.xlu0 %1281
  %v1284 = vmul.f32 %v1266, %v1282
  %v1285 = vpack.c.bf16 %v1284, %v1284
  %1287 = vrot.lane.b32.xlu0 %v1285, 32
  %v1288 = vpop.permute.xlu0 %1287
  %v1290 = vsel %vm68, %v1288, 0
  %1292 = vmatprep.subr.bf16.mxu0 0
  %1293 = vmatpush1.bf16.msra.mxu0 0
  %1294 = vmatprep.subr.bf16.mxu0 0
  %1295 = vmatpush1.bf16.msra.mxu0 0
  %1296 = vmatprep.subr.bf16.mxu0 0
  %1297 = vmatpush1.bf16.msra.mxu0 0
  %1298 = vmatprep.subr.bf16.mxu0 0
  %1299 = vmatpush1.bf16.msra.mxu0 0
  %1300 = vmatprep.subr.bf16.mxu0 0
  %1301 = vmatpush1.bf16.msra.mxu0 0
  %1302 = vmatprep.subr.bf16.mxu0 0
  %1303 = vmatpush1.bf16.msra.mxu0 0
  %1304 = vmatprep.subr.bf16.mxu0 0
  %1305 = vmatpush1.bf16.msra.mxu0 %v857
  %1306 = vmatprep.subr.bf16.mxu0 0
  %1307 = vmatpush1.bf16.msra.mxu0 %v856
  %1308 = vmatprep.subr.bf16.mxu0 0
  %1309 = vmatpush2.bf16.msra.mxu0 0
  %1310 = vmatprep.subr.bf16.mxu0 0
  %1311 = vmatpush2.bf16.msra.mxu0 0
  %1312 = vmatprep.subr.bf16.mxu0 0
  %1313 = vmatpush2.bf16.msra.mxu0 0
  %1314 = vmatprep.subr.bf16.mxu0 0
  %1315 = vmatpush2.bf16.msra.mxu0 0
  %1316 = vmatprep.subr.bf16.mxu0 0
  %1317 = vmatpush2.bf16.msra.mxu0 0
  %1318 = vmatprep.subr.bf16.mxu0 0
  %1319 = vmatpush2.bf16.msra.mxu0 0
  %1320 = vmatprep.subr.bf16.mxu0 0
  %1321 = vmatpush2.bf16.msra.mxu0 0
  %1322 = vmatprep.subr.bf16.mxu0 0
  %1323 = vmatpush2.bf16.msra.mxu0 0
  %1324 = vmatprep.mubr.bf16.mxu0 0
  %1325 = vmatmul.mubr.bf16.gmra.mxu0 %v1290
  %v1326 = vpop.f32.mrf.mxu0
  %v1327 = vadd.f32 0.0, %v1326
  %v1328 = vpop.f32.mrf.mxu0
  %v1329 = vpop.f32.mrf.mxu0
  %v1330 = vpop.f32.mrf.mxu0
  %1331 = vdwg.mxu0
  %v1332 = vadd.f32 %v842, %v1327
  %v1333 = vxor.u32 %v1332, 2147483648
  %v1334 = vmul.f32 %v1333, 1.442695
  %v1335 = vpow.pop %v1334
  %v1336 = vadd.f32 %v1335, 1.0
  %v1337 = vrcp.pop %v1336
  %v1338 = vmul.f32 1.0, %v1337
  %v1339 = vtanh.pop %v1332
  %v1340 = vmul.f32 %v1338, %v1278
  %1342 = vrot.lane.b32.xlu0 %v1339, 64
  %v1343 = vpop.permute.xlu0 %1342
  %v1345 = vmul.f32 %v1338, %v1343
  %1347 = vrot.lane.b32.xlu0 %v1345, 32
  %v1348 = vpop.permute.xlu0 %1347
  %v1350 = vadd.f32 %v1340, %v1348
  %v1351 = vtanh.pop %v1350
  %1353 = vrot.lane.b32.xlu0 %v1351, 64
  %v1354 = vpop.permute.xlu0 %1353
  %v1356 = vmul.f32 %v1338, %v1354
  %v1357 = vpack.c.bf16 %v1356, %v1356
  %1359 = vrot.lane.b32.xlu0 %v1357, 32
  %v1360 = vpop.permute.xlu0 %1359
  %v1362 = vsel %vm68, %v1360, 0
  %1364 = vmatprep.subr.bf16.mxu0 0
  %1365 = vmatpush1.bf16.msra.mxu0 0
  %1366 = vmatprep.subr.bf16.mxu0 0
  %1367 = vmatpush1.bf16.msra.mxu0 0
  %1368 = vmatprep.subr.bf16.mxu0 0
  %1369 = vmatpush1.bf16.msra.mxu0 0
  %1370 = vmatprep.subr.bf16.mxu0 0
  %1371 = vmatpush1.bf16.msra.mxu0 0
  %1372 = vmatprep.subr.bf16.mxu0 0
  %1373 = vmatpush1.bf16.msra.mxu0 0
  %1374 = vmatprep.subr.bf16.mxu0 0
  %1375 = vmatpush1.bf16.msra.mxu0 0
  %1376 = vmatprep.subr.bf16.mxu0 0
  %1377 = vmatpush1.bf16.msra.mxu0 %v857
  %1378 = vmatprep.subr.bf16.mxu0 0
  %1379 = vmatpush1.bf16.msra.mxu0 %v856
  %1380 = vmatprep.subr.bf16.mxu0 0
  %1381 = vmatpush2.bf16.msra.mxu0 0
  %1382 = vmatprep.subr.bf16.mxu0 0
  %1383 = vmatpush2.bf16.msra.mxu0 0
  %1384 = vmatprep.subr.bf16.mxu0 0
  %1385 = vmatpush2.bf16.msra.mxu0 0
  %1386 = vmatprep.subr.bf16.mxu0 0
  %1387 = vmatpush2.bf16.msra.mxu0 0
  %1388 = vmatprep.subr.bf16.mxu0 0
  %1389 = vmatpush2.bf16.msra.mxu0 0
  %1390 = vmatprep.subr.bf16.mxu0 0
  %1391 = vmatpush2.bf16.msra.mxu0 0
  %1392 = vmatprep.subr.bf16.mxu0 0
  %1393 = vmatpush2.bf16.msra.mxu0 0
  %1394 = vmatprep.subr.bf16.mxu0 0
  %1395 = vmatpush2.bf16.msra.mxu0 0
  %1396 = vmatprep.mubr.bf16.mxu0 0
  %1397 = vmatmul.mubr.bf16.gmra.mxu0 %v1362
  %v1398 = vpop.f32.mrf.mxu0
  %v1399 = vadd.f32 0.0, %v1398
  %v1400 = vpop.f32.mrf.mxu0
  %v1401 = vpop.f32.mrf.mxu0
  %v1402 = vpop.f32.mrf.mxu0
  %1403 = vdwg.mxu0
  %v1404 = vadd.f32 %v845, %v1399
  %v1405 = vxor.u32 %v1404, 2147483648
  %v1406 = vmul.f32 %v1405, 1.442695
  %v1407 = vpow.pop %v1406
  %v1408 = vadd.f32 %v1407, 1.0
  %v1409 = vrcp.pop %v1408
  %v1410 = vmul.f32 1.0, %v1409
  %v1411 = vtanh.pop %v1404
  %v1412 = vmul.f32 %v1410, %v1350
  %1414 = vrot.lane.b32.xlu0 %v1411, 64
  %v1415 = vpop.permute.xlu0 %1414
  %v1417 = vmul.f32 %v1410, %v1415
  %1419 = vrot.lane.b32.xlu0 %v1417, 32
  %v1420 = vpop.permute.xlu0 %1419
  %v1422 = vadd.f32 %v1412, %v1420
  %v1423 = vtanh.pop %v1422
  %1425 = vrot.lane.b32.xlu0 %v1423, 64
  %v1426 = vpop.permute.xlu0 %1425
  %v1428 = vmul.f32 %v1410, %v1426
  %v1429 = vpack.c.bf16 %v996, %v924
  %v1430 = vpack.c.bf16 %v1140, %v1068
  %v1431 = vpack.c.bf16 %v1284, %v1212
  %v1432 = vpack.c.bf16 %v1428, %v1356
  %v1433 = vld [vmem:[%s1 + $0x40] sm:$0xf]
  %v1434 = vld [vmem:[%s1 + $0x44] sm:$0xf]
  %v1435 = vld [vmem:[%s1 + $0x48] sm:$0xf]
  %v1436 = vld [vmem:[%s1 + $0x4c] sm:$0xf]
  %v1437 = vld [vmem:[%s1 + $0x50] sm:$0xf]
  %v1438 = vld [vmem:[%s1 + $0x54] sm:$0xf]
  %v1439 = vld [vmem:[%s1 + $0x58] sm:$0xf]
  %v1440 = vld [vmem:[%s1 + $0x5c] sm:$0xf]
  %v1441 = vld [vmem:[%s2 + $0x2] sm:$0x1]
  %v1442 = vld [vmem:[%s2 + $0x3] sm:$0x1]
  %v1443 = vlaneseq
  %v1444 = vshrl.u32 %v1443, 7
  %v1445 = vsub.s32 0, %v1444
  %v1446 = vrot.slane %v1441, %v1445
  %1451 = vrot.lane.b32.xlu0 %v1429, 32
  %v1452 = vpop.permute.xlu0 %1451
  %1453 = vrot.lane.b32.xlu0 %v1430, 32
  %v1454 = vpop.permute.xlu0 %1453
  %1455 = vrot.lane.b32.xlu0 %v1431, 32
  %v1456 = vpop.permute.xlu0 %1455
  %1457 = vrot.lane.b32.xlu0 %v1432, 32
  %v1458 = vpop.permute.xlu0 %1457
  %v1463 = vunpack.c.l.b16 %v1433
  %v1464 = vunpack.c.l.b16 %v1434
  %v1465 = vunpack.c.l.b16 %v1435
  %v1466 = vunpack.c.l.b16 %v1436
  %v1467 = vpack.c.b16 %v1464, %v1463
  %v1468 = vpack.c.b16 %v1466, %v1465
  %v1472 = vsel %vm68, %v1452, 0
  %v1475 = vsel %vm68, %v1454, 0
  %v1478 = vsel %vm68, %v1456, 0
  %v1481 = vsel %vm68, %v1458, 0
  %1483 = vmatprep.subr.bf16.mxu0 0
  %1484 = vmatpush1.bf16.msra.mxu0 0
  %1485 = vmatprep.subr.bf16.mxu0 0
  %1486 = vmatpush1.bf16.msra.mxu0 0
  %1487 = vmatprep.subr.bf16.mxu0 0
  %1488 = vmatpush1.bf16.msra.mxu0 0
  %1489 = vmatprep.subr.bf16.mxu0 0
  %1490 = vmatpush1.bf16.msra.mxu0 0
  %1491 = vmatprep.subr.bf16.mxu0 0
  %1492 = vmatpush1.bf16.msra.mxu0 0
  %1493 = vmatprep.subr.bf16.mxu0 0
  %1494 = vmatpush1.bf16.msra.mxu0 0
  %1495 = vmatprep.subr.bf16.mxu0 0
  %1496 = vmatpush1.bf16.msra.mxu0 %v1468
  %1497 = vmatprep.subr.bf16.mxu0 0
  %1498 = vmatpush1.bf16.msra.mxu0 %v1467
  %1499 = vmatprep.subr.bf16.mxu0 0
  %1500 = vmatpush2.bf16.msra.mxu0 0
  %1501 = vmatprep.subr.bf16.mxu0 0
  %1502 = vmatpush2.bf16.msra.mxu0 0
  %1503 = vmatprep.subr.bf16.mxu0 0
  %1504 = vmatpush2.bf16.msra.mxu0 0
  %1505 = vmatprep.subr.bf16.mxu0 0
  %1506 = vmatpush2.bf16.msra.mxu0 0
  %1507 = vmatprep.subr.bf16.mxu0 0
  %1508 = vmatpush2.bf16.msra.mxu0 0
  %1509 = vmatprep.subr.bf16.mxu0 0
  %1510 = vmatpush2.bf16.msra.mxu0 0
  %1511 = vmatprep.subr.bf16.mxu0 0
  %1512 = vmatpush2.bf16.msra.mxu0 0
  %1513 = vmatprep.subr.bf16.mxu0 0
  %1514 = vmatpush2.bf16.msra.mxu0 0
  %1515 = vmatprep.mubr.bf16.mxu0 0
  %1516 = vmatmul.mubr.bf16.gmra.mxu0 %v1472
  %v1517 = vpop.f32.mrf.mxu0
  %v1518 = vadd.f32 %v1446, %v1517
  %v1519 = vpop.f32.mrf.mxu0
  %v1520 = vpop.f32.mrf.mxu0
  %v1521 = vadd.f32 %v1446, %v1520
  %v1522 = vpop.f32.mrf.mxu0
  %1523 = vmatprep.mubr.bf16.mxu0 0
  %1524 = vmatmul.mubr.bf16.gmra.mxu0 %v1475
  %v1525 = vpop.f32.mrf.mxu0
  %v1526 = vadd.f32 %v1446, %v1525
  %v1527 = vpop.f32.mrf.mxu0
  %v1528 = vpop.f32.mrf.mxu0
  %v1529 = vadd.f32 %v1446, %v1528
  %v1530 = vpop.f32.mrf.mxu0
  %1531 = vmatprep.mubr.bf16.mxu0 0
  %1532 = vmatmul.mubr.bf16.gmra.mxu0 %v1478
  %v1533 = vpop.f32.mrf.mxu0
  %v1534 = vadd.f32 %v1446, %v1533
  %v1535 = vpop.f32.mrf.mxu0
  %v1536 = vpop.f32.mrf.mxu0
  %v1537 = vadd.f32 %v1446, %v1536
  %v1538 = vpop.f32.mrf.mxu0
  %1539 = vmatprep.mubr.bf16.mxu0 0
  %1540 = vmatmul.mubr.bf16.gmra.mxu0 %v1481
  %v1541 = vpop.f32.mrf.mxu0
  %v1542 = vadd.f32 %v1446, %v1541
  %v1543 = vpop.f32.mrf.mxu0
  %v1544 = vpop.f32.mrf.mxu0
  %v1545 = vadd.f32 %v1446, %v1544
  %v1546 = vpop.f32.mrf.mxu0
  %1547 = vdwg.mxu0
  %vm1548 = vcmp.gt.f32.partialorder %v1518, 0.0
  %vm1549 = vcmp.gt.f32.partialorder %v1521, 0.0
  %vm1550 = vcmp.gt.f32.partialorder %v1526, 0.0
  %vm1551 = vcmp.gt.f32.partialorder %v1529, 0.0
  %vm1552 = vcmp.gt.f32.partialorder %v1534, 0.0
  %vm1553 = vcmp.gt.f32.partialorder %v1537, 0.0
  %vm1554 = vcmp.gt.f32.partialorder %v1542, 0.0
  %vm1555 = vcmp.gt.f32.partialorder %v1545, 0.0
  %v1556 = vmul.f32 %v1518, 0.01
  %v1557 = vmul.f32 %v1521, 0.01
  %v1558 = vmul.f32 %v1526, 0.01
  %v1559 = vmul.f32 %v1529, 0.01
  %v1560 = vmul.f32 %v1534, 0.01
  %v1561 = vmul.f32 %v1537, 0.01
  %v1562 = vmul.f32 %v1542, 0.01
  %v1563 = vmul.f32 %v1545, 0.01
  %v1564 = vsel %vm1548, %v1518, %v1556
  %v1565 = vsel %vm1549, %v1521, %v1557
  %v1566 = vsel %vm1550, %v1526, %v1558
  %v1567 = vsel %vm1551, %v1529, %v1559
  %v1568 = vsel %vm1552, %v1534, %v1560
  %v1569 = vsel %vm1553, %v1537, %v1561
  %v1570 = vsel %vm1554, %v1542, %v1562
  %v1571 = vsel %vm1555, %v1545, %v1563
  %v1572 = vpack.c.bf16 %v1565, %v1564
  %v1573 = vpack.c.bf16 %v1567, %v1566
  %v1574 = vpack.c.bf16 %v1569, %v1568
  %v1575 = vpack.c.bf16 %v1571, %v1570
  %v1576 = vlaneseq
  %v1577 = vshrl.u32 %v1576, 7
  %v1578 = vsub.s32 0, %v1577
  %v1579 = vrot.slane %v1442, %v1578
  %v1584 = vunpack.c.l.b16 %v1437
  %v1585 = vunpack.c.l.b16 %v1438
  %v1586 = vunpack.c.l.b16 %v1439
  %v1587 = vunpack.c.l.b16 %v1440
  %v1588 = vpack.c.b16 %v1585, %v1584
  %v1589 = vpack.c.b16 %v1587, %v1586
  %v1593 = vsel %vm68, %v1572, 0
  %v1596 = vsel %vm68, %v1573, 0
  %v1599 = vsel %vm68, %v1574, 0
  %v1602 = vsel %vm68, %v1575, 0
  %1604 = vmatprep.subr.bf16.mxu0 0
  %1605 = vmatpush1.bf16.msra.mxu0 0
  %1606 = vmatprep.subr.bf16.mxu0 0
  %1607 = vmatpush1.bf16.msra.mxu0 0
  %1608 = vmatprep.subr.bf16.mxu0 0
  %1609 = vmatpush1.bf16.msra.mxu0 0
  %1610 = vmatprep.subr.bf16.mxu0 0
  %1611 = vmatpush1.bf16.msra.mxu0 0
  %1612 = vmatprep.subr.bf16.mxu0 0
  %1613 = vmatpush1.bf16.msra.mxu0 0
  %1614 = vmatprep.subr.bf16.mxu0 0
  %1615 = vmatpush1.bf16.msra.mxu0 0
  %1616 = vmatprep.subr.bf16.mxu0 0
  %1617 = vmatpush1.bf16.msra.mxu0 %v1589
  %1618 = vmatprep.subr.bf16.mxu0 0
  %1619 = vmatpush1.bf16.msra.mxu0 %v1588
  %1620 = vmatprep.subr.bf16.mxu0 0
  %1621 = vmatpush2.bf16.msra.mxu0 0
  %1622 = vmatprep.subr.bf16.mxu0 0
  %1623 = vmatpush2.bf16.msra.mxu0 0
  %1624 = vmatprep.subr.bf16.mxu0 0
  %1625 = vmatpush2.bf16.msra.mxu0 0
  %1626 = vmatprep.subr.bf16.mxu0 0
  %1627 = vmatpush2.bf16.msra.mxu0 0
  %1628 = vmatprep.subr.bf16.mxu0 0
  %1629 = vmatpush2.bf16.msra.mxu0 0
  %1630 = vmatprep.subr.bf16.mxu0 0
  %1631 = vmatpush2.bf16.msra.mxu0 0
  %1632 = vmatprep.subr.bf16.mxu0 0
  %1633 = vmatpush2.bf16.msra.mxu0 0
  %1634 = vmatprep.subr.bf16.mxu0 0
  %1635 = vmatpush2.bf16.msra.mxu0 0
  %1636 = vmatprep.mubr.bf16.mxu0 0
  %1637 = vmatmul.mubr.bf16.gmra.mxu0 %v1593
  %v1638 = vpop.f32.mrf.mxu0
  %v1639 = vadd.f32 %v1579, %v1638
  %v1640 = vpop.f32.mrf.mxu0
  %v1641 = vpop.f32.mrf.mxu0
  %v1642 = vadd.f32 %v1579, %v1641
  %v1643 = vpop.f32.mrf.mxu0
  %1644 = vmatprep.mubr.bf16.mxu0 0
  %1645 = vmatmul.mubr.bf16.gmra.mxu0 %v1596
  %v1646 = vpop.f32.mrf.mxu0
  %v1647 = vadd.f32 %v1579, %v1646
  %v1648 = vpop.f32.mrf.mxu0
  %v1649 = vpop.f32.mrf.mxu0
  %v1650 = vadd.f32 %v1579, %v1649
  %v1651 = vpop.f32.mrf.mxu0
  %1652 = vmatprep.mubr.bf16.mxu0 0
  %1653 = vmatmul.mubr.bf16.gmra.mxu0 %v1599
  %v1654 = vpop.f32.mrf.mxu0
  %v1655 = vadd.f32 %v1579, %v1654
  %v1656 = vpop.f32.mrf.mxu0
  %v1657 = vpop.f32.mrf.mxu0
  %v1658 = vadd.f32 %v1579, %v1657
  %v1659 = vpop.f32.mrf.mxu0
  %1660 = vmatprep.mubr.bf16.mxu0 0
  %1661 = vmatmul.mubr.bf16.gmra.mxu0 %v1602
  %v1662 = vpop.f32.mrf.mxu0
  %v1663 = vadd.f32 %v1579, %v1662
  %v1664 = vpop.f32.mrf.mxu0
  %v1665 = vpop.f32.mrf.mxu0
  %v1666 = vadd.f32 %v1579, %v1665
  %v1667 = vpop.f32.mrf.mxu0
  %1668 = vdwg.mxu0
  %1669 = vmax.xlane.f32.xlu0 %v1639
  %v1670 = vpop.xlane.xlu0 %1669
  %1671 = vmax.xlane.f32.xlu0 %v1642
  %v1672 = vpop.xlane.xlu0 %1671
  %1673 = vmax.xlane.f32.xlu0 %v1647
  %v1674 = vpop.xlane.xlu0 %1673
  %1675 = vmax.xlane.f32.xlu0 %v1650
  %v1676 = vpop.xlane.xlu0 %1675
  %1677 = vmax.xlane.f32.xlu0 %v1655
  %v1678 = vpop.xlane.xlu0 %1677
  %1679 = vmax.xlane.f32.xlu0 %v1658
  %v1680 = vpop.xlane.xlu0 %1679
  %1681 = vmax.xlane.f32.xlu0 %v1663
  %v1682 = vpop.xlane.xlu0 %1681
  %1683 = vmax.xlane.f32.xlu0 %v1666
  %v1684 = vpop.xlane.xlu0 %1683
  %v1685 = vsub.f32 %v1639, %v1670
  %v1686 = vsub.f32 %v1642, %v1672
  %v1687 = vsub.f32 %v1647, %v1674
  %v1688 = vsub.f32 %v1650, %v1676
  %v1689 = vsub.f32 %v1655, %v1678
  %v1690 = vsub.f32 %v1658, %v1680
  %v1691 = vsub.f32 %v1663, %v1682
  %v1692 = vsub.f32 %v1666, %v1684
  %v1693 = vmul.f32 %v1685, 1.442695
  %v1694 = vpow.pop %v1693
  %v1695 = vmul.f32 %v1686, 1.442695
  %v1696 = vpow.pop %v1695
  %v1697 = vmul.f32 %v1687, 1.442695
  %v1698 = vpow.pop %v1697
  %v1699 = vmul.f32 %v1688, 1.442695
  %v1700 = vpow.pop %v1699
  %v1701 = vmul.f32 %v1689, 1.442695
  %v1702 = vpow.pop %v1701
  %v1703 = vmul.f32 %v1690, 1.442695
  %v1704 = vpow.pop %v1703
  %v1705 = vmul.f32 %v1691, 1.442695
  %v1706 = vpow.pop %v1705
  %v1707 = vmul.f32 %v1692, 1.442695
  %v1708 = vpow.pop %v1707
  %1709 = vadd.xlane.f32.xlu0 %v1694
  %v1710 = vpop.xlane.xlu0 %1709
  %1711 = vadd.xlane.f32.xlu0 %v1696
  %v1712 = vpop.xlane.xlu0 %1711
  %1713 = vadd.xlane.f32.xlu0 %v1698
  %v1714 = vpop.xlane.xlu0 %1713
  %1715 = vadd.xlane.f32.xlu0 %v1700
  %v1716 = vpop.xlane.xlu0 %1715
  %1717 = vadd.xlane.f32.xlu0 %v1702
  %v1718 = vpop.xlane.xlu0 %1717
  %1719 = vadd.xlane.f32.xlu0 %v1704
  %v1720 = vpop.xlane.xlu0 %1719
  %1721 = vadd.xlane.f32.xlu0 %v1706
  %v1722 = vpop.xlane.xlu0 %1721
  %1723 = vadd.xlane.f32.xlu0 %v1708
  %v1724 = vpop.xlane.xlu0 %1723
  %v1725 = vlog2.pop %v1710
  %v1726 = vmul.f32 %v1725, 0.6931472
  %v1727 = vlog2.pop %v1712
  %v1728 = vmul.f32 %v1727, 0.6931472
  %v1729 = vlog2.pop %v1714
  %v1730 = vmul.f32 %v1729, 0.6931472
  %v1731 = vlog2.pop %v1716
  %v1732 = vmul.f32 %v1731, 0.6931472
  %v1733 = vlog2.pop %v1718
  %v1734 = vmul.f32 %v1733, 0.6931472
  %v1735 = vlog2.pop %v1720
  %v1736 = vmul.f32 %v1735, 0.6931472
  %v1737 = vlog2.pop %v1722
  %v1738 = vmul.f32 %v1737, 0.6931472
  %v1739 = vlog2.pop %v1724
  %v1740 = vmul.f32 %v1739, 0.6931472
  %v1741 = vsub.f32 %v1685, %v1726
  %v1742 = vsub.f32 %v1686, %v1728
  %v1743 = vsub.f32 %v1687, %v1730
  %v1744 = vsub.f32 %v1688, %v1732
  %v1745 = vsub.f32 %v1689, %v1734
  %v1746 = vsub.f32 %v1690, %v1736
  %v1747 = vsub.f32 %v1691, %v1738
  %v1748 = vsub.f32 %v1692, %v1740
  %1749 = vst [vmem:[%s3] sm:$0xff] %v1741
  %1750 = vst [vmem:[%s3 + $0x8] sm:$0xff] %v1742
  %1751 = vst [vmem:[%s3 + $0x10] sm:$0xff] %v1743
  %1752 = vst [vmem:[%s3 + $0x18] sm:$0xff] %v1744
  %1753 = vst [vmem:[%s3 + $0x20] sm:$0xff] %v1745
  %1754 = vst [vmem:[%s3 + $0x28] sm:$0xff] %v1746
  %1755 = vst [vmem:[%s3 + $0x30] sm:$0xff] %v1747
  %1756 = vst [vmem:[%s3 + $0x38] sm:$0xff] %v1748
  // Predicated region
  $region14: #{act_traj_gen_forward.1} parent=0 // pred_check
    _
  $region15: #{act_traj_gen_forward.1} parent=0 // pred_check_branch
    %1758 = sbr.rel (0) target = $region17
  $region16: #{act_traj_gen_forward.1} parent=0 // pred_region
    _
  $region17: #{act_traj_gen_forward.1} parent=0 // pred_fallthru
    _
  // Predicated region
  $region18: #{act_traj_gen_forward.1} parent=0 // pred_check
    _
  $region19: #{act_traj_gen_forward.1} parent=0 // pred_check_branch
    %1760 = sbr.rel (0) target = $region21
  $region20: #{act_traj_gen_forward.1} parent=0 // pred_region
    _
  $region21: #{act_traj_gen_forward.1} parent=0 // pred_fallthru
    _

</llo_original>
